<compile_context>
chip_gen: v7x
topology: tpu7x:2x2x1
jax: 0.10.0
libtpu: 0.0.40
codegen_flags: <defaults>
</compile_context>

<pallas_src>
import functools

import jax
import jax.numpy as jnp
import numpy as np
from jax import lax
from jax.experimental import pallas as pl
from jax.experimental.pallas import tpu as pltpu

K = 7      # SA conv kernel size
PAD = 3    # padding for kernel_size == 7


# ---------------------------------------------------------------------------
# Small helpers
# ---------------------------------------------------------------------------
def _shift_flat(x, k):
    """result[..., i] = x[..., i + k] if 0 <= i + k < N else 0 (static k)."""
    if k == 0:
        return x
    n = x.shape[-1]
    if abs(k) >= n:
        return jnp.zeros_like(x)
    z = jnp.zeros(x.shape[:-1] + (abs(k),), x.dtype)
    if k > 0:
        return jnp.concatenate([x[..., k:], z], axis=-1)
    return jnp.concatenate([z, x[..., : n + k]], axis=-1)


def _pick_batch_tile(batch, per_image_bytes, target_bytes=1 << 20):
    """Images per grid step: divide B, keep >=2 steps when B>=2 (v7x megacore),
    keep each resident block under ~1 MiB."""
    best = 1
    for bt in range(1, batch + 1):
        if batch % bt:
            continue
        if batch >= 2 and batch // bt < 2:
            continue
        if bt * per_image_bytes > target_bytes:
            continue
        best = bt
    return best


# ---------------------------------------------------------------------------
# Pallas kernel
# ---------------------------------------------------------------------------
def _sa_kernel(w_ref, cmask_ref, x1_ref, x2_ref, o_ref, *, width):
    """Per batch tile: channel stats + 7x7 conv + sigmoid + spatial gating.

    w_ref      : SMEM (2*K*K,) flattened conv weight, layout [c, ky, kx]
                 (c=0 -> avg channel, c=1 -> max channel, matching
                  torch.cat([avg_out, max_out], dim=1)).
    cmask_ref  : VMEM (K, 1, HW) {0,1} column-validity masks (row-boundary
                 zeroing for the flat dx lane shifts).
    x1_ref/x2_ref/o_ref : VMEM (Bt, C, HW) lane-dense blocks.
    width      : static spatial width W (HW == H*W).
    """
    bt, _, hw = x1_ref.shape

    # ---- channel stats: reduce over C (sublane axis), f32 ----
    x2 = x2_ref[...].astype(jnp.float32)                 # [Bt, C, HW]
    avg = jnp.mean(x2, axis=1)                           # [Bt, HW]
    mx = jnp.max(x2, axis=1)                             # [Bt, HW]

    # ---- read all 98 conv weights from SMEM once, before the tap loops ----
    w_avg = [[w_ref[0 * K * K + dy * K + dx] for dx in range(K)] for dy in range(K)]
    w_max = [[w_ref[1 * K * K + dy * K + dx] for dx in range(K)] for dy in range(K)]

    # ---- hoisted dx (column) shifts: 12 lane shifts total ----
    sh_avg, sh_max = [], []
    for dx in range(K):
        s = dx - PAD
        a = _shift_flat(avg, s)
        m = _shift_flat(mx, s)
        if s != 0:
            cm = cmask_ref[dx]                            # (1, HW) {0,1}
            a = a * cm
            m = m * cm
        sh_avg.append(a)
        sh_max.append(m)

    # ---- 49-tap conv: per dy, combine the 14 pre-shifted maps with scalar
    #      weights (VPU FMAs, two independent partials), then ONE row shift
    #      (lane shift by (dy-3)*W with zero fill); 4 independent accumulators
    #      break the serial add chain. ----
    accs = [jnp.zeros((bt, hw), jnp.float32) for _ in range(4)]
    for dy in range(K):
        t0 = w_avg[dy][0] * sh_avg[0]
        t1 = w_max[dy][0] * sh_max[0]
        for dx in range(1, K):
            t0 = t0 + w_avg[dy][dx] * sh_avg[dx]
            t1 = t1 + w_max[dy][dx] * sh_max[dx]
        t = _shift_flat(t0 + t1, (dy - PAD) * width)
        accs[dy % 4] = accs[dy % 4] + t
    conv = (accs[0] + accs[1]) + (accs[2] + accs[3])      # [Bt, HW]

    gate = jax.nn.sigmoid(conv)                           # EUP
    x1 = x1_ref[...].astype(jnp.float32)                  # [Bt, C, HW]
    o_ref[...] = (x1 * gate[:, None, :]).astype(o_ref.dtype)


# ---------------------------------------------------------------------------
# pallas_call wrapper on the flat [B, C, H*W] view
# ---------------------------------------------------------------------------
def sa_pallas_flat(x1f, x2f, w, height, width):
    """x1f, x2f: [B, C, H*W]; w: [2, K, K] conv weight (out-channel squeezed)."""
    del height  # only W is needed in-kernel
    B, C, HW = x1f.shape
    w_flat = w.reshape(-1).astype(jnp.float32)            # (2*K*K,) -> SMEM scalars

    # Column-validity masks for the 7 dx offsets (static per (H, W); built with
    # numpy at trace time, passed as a tiny VMEM input -> no in-kernel int div).
    cols = np.arange(HW) % width
    cmask_np = np.stack(
        [((cols + (dx - PAD) >= 0) & (cols + (dx - PAD) < width)).astype(np.float32)
         for dx in range(K)], axis=0).reshape(K, 1, HW)
    cmask = jnp.asarray(cmask_np)

    per_image_bytes = C * HW * x1f.dtype.itemsize
    bt = _pick_batch_tile(B, per_image_bytes)
    grid = (B // bt,)

    block = (bt, C, HW)
    idx = lambda b: (b, 0, 0)

    # 3 big blocks, double-buffered, plus the small mask; generous floor/cap.
    vmem_bytes = 2 * 3 * bt * C * HW * 4 + K * HW * 4 + (2 << 20)
    vmem_bytes = int(min(max(vmem_bytes, 8 << 20), 64 << 20))

    kernel = functools.partial(_sa_kernel, width=width)
    return pl.pallas_call(
        kernel,
        out_shape=jax.ShapeDtypeStruct((B, C, HW), x1f.dtype),
        grid_spec=pltpu.PrefetchScalarGridSpec(
            num_scalar_prefetch=0,
            grid=grid,
            in_specs=[
                pl.BlockSpec(memory_space=pltpu.MemorySpace.SMEM),   # conv weights
                pl.BlockSpec((K, 1, HW), lambda b: (0, 0, 0)),       # column masks
                pl.BlockSpec(block, idx),                            # x1
                pl.BlockSpec(block, idx),                            # x2
            ],
            out_specs=pl.BlockSpec(block, idx),
        ),
        compiler_params=pltpu.CompilerParams(
            dimension_semantics=("parallel",),
            vmem_limit_bytes=vmem_bytes,
        ),
    )(w_flat, cmask, x1f, x2f)


def sa_forward(x1_nchw, x2_nchw, w):
    """Matches SA.forward: NCHW in, NCHW out.  The [B,C,HW] views are free reshapes
    of the contiguous NCHW layout (no HBM transpose traffic)."""
    B, C, H, W = x1_nchw.shape
    out = sa_pallas_flat(x1_nchw.reshape(B, C, H * W),
                         x2_nchw.reshape(B, C, H * W), w, H, W)
    return out.reshape(B, C, H, W)


# ---------------------------------------------------------------------------
# Pure-JAX reference (NCHW, mirrors the PyTorch module) for correctness check
# ---------------------------------------------------------------------------
def sa_reference(x1, x2, w):
    mx = jnp.max(x2, axis=1, keepdims=True)
    av = jnp.mean(x2, axis=1, keepdims=True)
    st = jnp.concatenate([av, mx], axis=1)                 # [B, 2, H, W]
    wk = w.reshape(1, 2, K, K)                             # OIHW
    s = lax.conv_general_dilated(
        st, wk, window_strides=(1, 1), padding=[(PAD, PAD), (PAD, PAD)],
        dimension_numbers=('NCHW', 'OIHW', 'NCHW'))
    return jax.nn.sigmoid(s) * x1


# ---------------------------------------------------------------------------
if __name__ == "__main__":
    key = jax.random.PRNGKey(0)
    k1, k2, kw = jax.random.split(key, 3)
    B, C, H, W = 2, 32, 16, 16
    x1 = jax.random.normal(k1, (B, C, H, W), jnp.float32)
    x2 = jax.random.normal(k2, (B, C, H, W), jnp.float32)
    # conv1.weight of shape [1, 2, 7, 7] with the out-channel dim squeezed.
    w = (0.2 * jax.random.normal(kw, (2, K, K))).astype(jnp.float32)

    out = jax.jit(sa_forward)(x1, x2, w)
    out = jax.block_until_ready(out)

    ref = sa_reference(x1, x2, w)
    np.testing.assert_allclose(np.asarray(out), np.asarray(ref),
                               rtol=1e-3, atol=1e-3)
    print("KERNEL_OK")
</pallas_src>

<mosaic_0001>
module attributes {stable_mosaic.version = 11 : i64} {
  func.func @_sa_kernel(%arg0: i32, %arg1: memref<98xf32, #tpu.memory_space<smem>>, %arg2: memref<7x1x256xf32, #tpu.memory_space<vmem>>, %arg3: memref<1x32x256xf32, #tpu.memory_space<vmem>>, %arg4: memref<1x32x256xf32, #tpu.memory_space<vmem>>, %arg5: memref<1x32x256xf32, #tpu.memory_space<vmem>>) attributes {dimension_semantics = [#tpu.dimension_semantics<parallel>], iteration_bounds = array<i64: 2>, scalar_prefetch = 0 : i64, scratch_operands = 0 : i64, tpu.core_type = #tpu.core_type<tc>, window_params = [{transform_indices = @transform_0, window_bounds = array<i64: 98>}, {pipeline_mode = #tpu.pipeline_mode<synchronous>, transform_indices = @transform_1, window_bounds = array<i64: 7, 1, 256>}, {transform_indices = @transform_2, window_bounds = array<i64: 1, 32, 256>}, {transform_indices = @transform_3, window_bounds = array<i64: 1, 32, 256>}, {transform_indices = @transform_4, window_bounds = array<i64: 1, 32, 256>}]} {
    %c0 = arith.constant 0 : index
    %c0_0 = arith.constant 0 : index
    %c0_1 = arith.constant 0 : index
    %0 = vector.load %arg4[%c0, %c0_0, %c0_1] : memref<1x32x256xf32, #tpu.memory_space<vmem>>, vector<1x32x256xf32>
    %cst = arith.constant dense<0.000000e+00> : vector<1x256xf32>
    %1 = vector.multi_reduction <add>, %0, %cst [1] : vector<1x32x256xf32> to vector<1x256xf32>
    %cst_2 = arith.constant 3.200000e+01 : f32
    %2 = vector.broadcast %cst_2 : f32 to vector<1x256xf32>
    %3 = arith.divf %1, %2 : vector<1x256xf32>
    %cst_3 = arith.constant dense<0xFF800000> : vector<1x256xf32>
    %4 = vector.multi_reduction <maximumf>, %0, %cst_3 [1] : vector<1x32x256xf32> to vector<1x256xf32>
    %c0_4 = arith.constant 0 : index
    %5 = memref.load %arg1[%c0_4] : memref<98xf32, #tpu.memory_space<smem>>
    %c1 = arith.constant 1 : index
    %6 = memref.load %arg1[%c1] : memref<98xf32, #tpu.memory_space<smem>>
    %c2 = arith.constant 2 : index
    %7 = memref.load %arg1[%c2] : memref<98xf32, #tpu.memory_space<smem>>
    %c3 = arith.constant 3 : index
    %8 = memref.load %arg1[%c3] : memref<98xf32, #tpu.memory_space<smem>>
    %c4 = arith.constant 4 : index
    %9 = memref.load %arg1[%c4] : memref<98xf32, #tpu.memory_space<smem>>
    %c5 = arith.constant 5 : index
    %10 = memref.load %arg1[%c5] : memref<98xf32, #tpu.memory_space<smem>>
    %c6 = arith.constant 6 : index
    %11 = memref.load %arg1[%c6] : memref<98xf32, #tpu.memory_space<smem>>
    %c7 = arith.constant 7 : index
    %12 = memref.load %arg1[%c7] : memref<98xf32, #tpu.memory_space<smem>>
    %c8 = arith.constant 8 : index
    %13 = memref.load %arg1[%c8] : memref<98xf32, #tpu.memory_space<smem>>
    %c9 = arith.constant 9 : index
    %14 = memref.load %arg1[%c9] : memref<98xf32, #tpu.memory_space<smem>>
    %c10 = arith.constant 10 : index
    %15 = memref.load %arg1[%c10] : memref<98xf32, #tpu.memory_space<smem>>
    %c11 = arith.constant 11 : index
    %16 = memref.load %arg1[%c11] : memref<98xf32, #tpu.memory_space<smem>>
    %c12 = arith.constant 12 : index
    %17 = memref.load %arg1[%c12] : memref<98xf32, #tpu.memory_space<smem>>
    %c13 = arith.constant 13 : index
    %18 = memref.load %arg1[%c13] : memref<98xf32, #tpu.memory_space<smem>>
    %c14 = arith.constant 14 : index
    %19 = memref.load %arg1[%c14] : memref<98xf32, #tpu.memory_space<smem>>
    %c15 = arith.constant 15 : index
    %20 = memref.load %arg1[%c15] : memref<98xf32, #tpu.memory_space<smem>>
    %c16 = arith.constant 16 : index
    %21 = memref.load %arg1[%c16] : memref<98xf32, #tpu.memory_space<smem>>
    %c17 = arith.constant 17 : index
    %22 = memref.load %arg1[%c17] : memref<98xf32, #tpu.memory_space<smem>>
    %c18 = arith.constant 18 : index
    %23 = memref.load %arg1[%c18] : memref<98xf32, #tpu.memory_space<smem>>
    %c19 = arith.constant 19 : index
    %24 = memref.load %arg1[%c19] : memref<98xf32, #tpu.memory_space<smem>>
    %c20 = arith.constant 20 : index
    %25 = memref.load %arg1[%c20] : memref<98xf32, #tpu.memory_space<smem>>
    %c21 = arith.constant 21 : index
    %26 = memref.load %arg1[%c21] : memref<98xf32, #tpu.memory_space<smem>>
    %c22 = arith.constant 22 : index
    %27 = memref.load %arg1[%c22] : memref<98xf32, #tpu.memory_space<smem>>
    %c23 = arith.constant 23 : index
    %28 = memref.load %arg1[%c23] : memref<98xf32, #tpu.memory_space<smem>>
    %c24 = arith.constant 24 : index
    %29 = memref.load %arg1[%c24] : memref<98xf32, #tpu.memory_space<smem>>
    %c25 = arith.constant 25 : index
    %30 = memref.load %arg1[%c25] : memref<98xf32, #tpu.memory_space<smem>>
    %c26 = arith.constant 26 : index
    %31 = memref.load %arg1[%c26] : memref<98xf32, #tpu.memory_space<smem>>
    %c27 = arith.constant 27 : index
    %32 = memref.load %arg1[%c27] : memref<98xf32, #tpu.memory_space<smem>>
    %c28 = arith.constant 28 : index
    %33 = memref.load %arg1[%c28] : memref<98xf32, #tpu.memory_space<smem>>
    %c29 = arith.constant 29 : index
    %34 = memref.load %arg1[%c29] : memref<98xf32, #tpu.memory_space<smem>>
    %c30 = arith.constant 30 : index
    %35 = memref.load %arg1[%c30] : memref<98xf32, #tpu.memory_space<smem>>
    %c31 = arith.constant 31 : index
    %36 = memref.load %arg1[%c31] : memref<98xf32, #tpu.memory_space<smem>>
    %c32 = arith.constant 32 : index
    %37 = memref.load %arg1[%c32] : memref<98xf32, #tpu.memory_space<smem>>
    %c33 = arith.constant 33 : index
    %38 = memref.load %arg1[%c33] : memref<98xf32, #tpu.memory_space<smem>>
    %c34 = arith.constant 34 : index
    %39 = memref.load %arg1[%c34] : memref<98xf32, #tpu.memory_space<smem>>
    %c35 = arith.constant 35 : index
    %40 = memref.load %arg1[%c35] : memref<98xf32, #tpu.memory_space<smem>>
    %c36 = arith.constant 36 : index
    %41 = memref.load %arg1[%c36] : memref<98xf32, #tpu.memory_space<smem>>
    %c37 = arith.constant 37 : index
    %42 = memref.load %arg1[%c37] : memref<98xf32, #tpu.memory_space<smem>>
    %c38 = arith.constant 38 : index
    %43 = memref.load %arg1[%c38] : memref<98xf32, #tpu.memory_space<smem>>
    %c39 = arith.constant 39 : index
    %44 = memref.load %arg1[%c39] : memref<98xf32, #tpu.memory_space<smem>>
    %c40 = arith.constant 40 : index
    %45 = memref.load %arg1[%c40] : memref<98xf32, #tpu.memory_space<smem>>
    %c41 = arith.constant 41 : index
    %46 = memref.load %arg1[%c41] : memref<98xf32, #tpu.memory_space<smem>>
    %c42 = arith.constant 42 : index
    %47 = memref.load %arg1[%c42] : memref<98xf32, #tpu.memory_space<smem>>
    %c43 = arith.constant 43 : index
    %48 = memref.load %arg1[%c43] : memref<98xf32, #tpu.memory_space<smem>>
    %c44 = arith.constant 44 : index
    %49 = memref.load %arg1[%c44] : memref<98xf32, #tpu.memory_space<smem>>
    %c45 = arith.constant 45 : index
    %50 = memref.load %arg1[%c45] : memref<98xf32, #tpu.memory_space<smem>>
    %c46 = arith.constant 46 : index
    %51 = memref.load %arg1[%c46] : memref<98xf32, #tpu.memory_space<smem>>
    %c47 = arith.constant 47 : index
    %52 = memref.load %arg1[%c47] : memref<98xf32, #tpu.memory_space<smem>>
    %c48 = arith.constant 48 : index
    %53 = memref.load %arg1[%c48] : memref<98xf32, #tpu.memory_space<smem>>
    %c49 = arith.constant 49 : index
    %54 = memref.load %arg1[%c49] : memref<98xf32, #tpu.memory_space<smem>>
    %c50 = arith.constant 50 : index
    %55 = memref.load %arg1[%c50] : memref<98xf32, #tpu.memory_space<smem>>
    %c51 = arith.constant 51 : index
    %56 = memref.load %arg1[%c51] : memref<98xf32, #tpu.memory_space<smem>>
    %c52 = arith.constant 52 : index
    %57 = memref.load %arg1[%c52] : memref<98xf32, #tpu.memory_space<smem>>
    %c53 = arith.constant 53 : index
    %58 = memref.load %arg1[%c53] : memref<98xf32, #tpu.memory_space<smem>>
    %c54 = arith.constant 54 : index
    %59 = memref.load %arg1[%c54] : memref<98xf32, #tpu.memory_space<smem>>
    %c55 = arith.constant 55 : index
    %60 = memref.load %arg1[%c55] : memref<98xf32, #tpu.memory_space<smem>>
    %c56 = arith.constant 56 : index
    %61 = memref.load %arg1[%c56] : memref<98xf32, #tpu.memory_space<smem>>
    %c57 = arith.constant 57 : index
    %62 = memref.load %arg1[%c57] : memref<98xf32, #tpu.memory_space<smem>>
    %c58 = arith.constant 58 : index
    %63 = memref.load %arg1[%c58] : memref<98xf32, #tpu.memory_space<smem>>
    %c59 = arith.constant 59 : index
    %64 = memref.load %arg1[%c59] : memref<98xf32, #tpu.memory_space<smem>>
    %c60 = arith.constant 60 : index
    %65 = memref.load %arg1[%c60] : memref<98xf32, #tpu.memory_space<smem>>
    %c61 = arith.constant 61 : index
    %66 = memref.load %arg1[%c61] : memref<98xf32, #tpu.memory_space<smem>>
    %c62 = arith.constant 62 : index
    %67 = memref.load %arg1[%c62] : memref<98xf32, #tpu.memory_space<smem>>
    %c63 = arith.constant 63 : index
    %68 = memref.load %arg1[%c63] : memref<98xf32, #tpu.memory_space<smem>>
    %c64 = arith.constant 64 : index
    %69 = memref.load %arg1[%c64] : memref<98xf32, #tpu.memory_space<smem>>
    %c65 = arith.constant 65 : index
    %70 = memref.load %arg1[%c65] : memref<98xf32, #tpu.memory_space<smem>>
    %c66 = arith.constant 66 : index
    %71 = memref.load %arg1[%c66] : memref<98xf32, #tpu.memory_space<smem>>
    %c67 = arith.constant 67 : index
    %72 = memref.load %arg1[%c67] : memref<98xf32, #tpu.memory_space<smem>>
    %c68 = arith.constant 68 : index
    %73 = memref.load %arg1[%c68] : memref<98xf32, #tpu.memory_space<smem>>
    %c69 = arith.constant 69 : index
    %74 = memref.load %arg1[%c69] : memref<98xf32, #tpu.memory_space<smem>>
    %c70 = arith.constant 70 : index
    %75 = memref.load %arg1[%c70] : memref<98xf32, #tpu.memory_space<smem>>
    %c71 = arith.constant 71 : index
    %76 = memref.load %arg1[%c71] : memref<98xf32, #tpu.memory_space<smem>>
    %c72 = arith.constant 72 : index
    %77 = memref.load %arg1[%c72] : memref<98xf32, #tpu.memory_space<smem>>
    %c73 = arith.constant 73 : index
    %78 = memref.load %arg1[%c73] : memref<98xf32, #tpu.memory_space<smem>>
    %c74 = arith.constant 74 : index
    %79 = memref.load %arg1[%c74] : memref<98xf32, #tpu.memory_space<smem>>
    %c75 = arith.constant 75 : index
    %80 = memref.load %arg1[%c75] : memref<98xf32, #tpu.memory_space<smem>>
    %c76 = arith.constant 76 : index
    %81 = memref.load %arg1[%c76] : memref<98xf32, #tpu.memory_space<smem>>
    %c77 = arith.constant 77 : index
    %82 = memref.load %arg1[%c77] : memref<98xf32, #tpu.memory_space<smem>>
    %c78 = arith.constant 78 : index
    %83 = memref.load %arg1[%c78] : memref<98xf32, #tpu.memory_space<smem>>
    %c79 = arith.constant 79 : index
    %84 = memref.load %arg1[%c79] : memref<98xf32, #tpu.memory_space<smem>>
    %c80 = arith.constant 80 : index
    %85 = memref.load %arg1[%c80] : memref<98xf32, #tpu.memory_space<smem>>
    %c81 = arith.constant 81 : index
    %86 = memref.load %arg1[%c81] : memref<98xf32, #tpu.memory_space<smem>>
    %c82 = arith.constant 82 : index
    %87 = memref.load %arg1[%c82] : memref<98xf32, #tpu.memory_space<smem>>
    %c83 = arith.constant 83 : index
    %88 = memref.load %arg1[%c83] : memref<98xf32, #tpu.memory_space<smem>>
    %c84 = arith.constant 84 : index
    %89 = memref.load %arg1[%c84] : memref<98xf32, #tpu.memory_space<smem>>
    %c85 = arith.constant 85 : index
    %90 = memref.load %arg1[%c85] : memref<98xf32, #tpu.memory_space<smem>>
    %c86 = arith.constant 86 : index
    %91 = memref.load %arg1[%c86] : memref<98xf32, #tpu.memory_space<smem>>
    %c87 = arith.constant 87 : index
    %92 = memref.load %arg1[%c87] : memref<98xf32, #tpu.memory_space<smem>>
    %c88 = arith.constant 88 : index
    %93 = memref.load %arg1[%c88] : memref<98xf32, #tpu.memory_space<smem>>
    %c89 = arith.constant 89 : index
    %94 = memref.load %arg1[%c89] : memref<98xf32, #tpu.memory_space<smem>>
    %c90 = arith.constant 90 : index
    %95 = memref.load %arg1[%c90] : memref<98xf32, #tpu.memory_space<smem>>
    %c91 = arith.constant 91 : index
    %96 = memref.load %arg1[%c91] : memref<98xf32, #tpu.memory_space<smem>>
    %c92 = arith.constant 92 : index
    %97 = memref.load %arg1[%c92] : memref<98xf32, #tpu.memory_space<smem>>
    %c93 = arith.constant 93 : index
    %98 = memref.load %arg1[%c93] : memref<98xf32, #tpu.memory_space<smem>>
    %c94 = arith.constant 94 : index
    %99 = memref.load %arg1[%c94] : memref<98xf32, #tpu.memory_space<smem>>
    %c95 = arith.constant 95 : index
    %100 = memref.load %arg1[%c95] : memref<98xf32, #tpu.memory_space<smem>>
    %c96 = arith.constant 96 : index
    %101 = memref.load %arg1[%c96] : memref<98xf32, #tpu.memory_space<smem>>
    %c97 = arith.constant 97 : index
    %102 = memref.load %arg1[%c97] : memref<98xf32, #tpu.memory_space<smem>>
    %cst_5 = arith.constant 0.000000e+00 : f32
    %103 = vector.broadcast %cst_5 : f32 to vector<1x3xf32>
    %104 = vector.extract_strided_slice %3 {offsets = [0, 0], sizes = [1, 253], strides = [1, 1]} : vector<1x256xf32> to vector<1x253xf32>
    %105 = tpu.concatenate %103, %104 in 1 : vector<1x3xf32>, vector<1x253xf32> -> vector<1x256xf32>
    %cst_6 = arith.constant 0.000000e+00 : f32
    %106 = vector.broadcast %cst_6 : f32 to vector<1x3xf32>
    %107 = vector.extract_strided_slice %4 {offsets = [0, 0], sizes = [1, 253], strides = [1, 1]} : vector<1x256xf32> to vector<1x253xf32>
    %108 = tpu.concatenate %106, %107 in 1 : vector<1x3xf32>, vector<1x253xf32> -> vector<1x256xf32>
    %c0_7 = arith.constant 0 : index
    %c0_8 = arith.constant 0 : index
    %c0_9 = arith.constant 0 : index
    %109 = vector.load %arg2[%c0_7, %c0_8, %c0_9] : memref<7x1x256xf32, #tpu.memory_space<vmem>>, vector<1x1x256xf32>
    %110 = vector.shape_cast %109 : vector<1x1x256xf32> to vector<1x256xf32>
    %111 = arith.mulf %105, %110 : vector<1x256xf32>
    %112 = arith.mulf %108, %110 : vector<1x256xf32>
    %cst_10 = arith.constant 0.000000e+00 : f32
    %113 = vector.broadcast %cst_10 : f32 to vector<1x2xf32>
    %114 = vector.extract_strided_slice %3 {offsets = [0, 0], sizes = [1, 254], strides = [1, 1]} : vector<1x256xf32> to vector<1x254xf32>
    %115 = tpu.concatenate %113, %114 in 1 : vector<1x2xf32>, vector<1x254xf32> -> vector<1x256xf32>
    %cst_11 = arith.constant 0.000000e+00 : f32
    %116 = vector.broadcast %cst_11 : f32 to vector<1x2xf32>
    %117 = vector.extract_strided_slice %4 {offsets = [0, 0], sizes = [1, 254], strides = [1, 1]} : vector<1x256xf32> to vector<1x254xf32>
    %118 = tpu.concatenate %116, %117 in 1 : vector<1x2xf32>, vector<1x254xf32> -> vector<1x256xf32>
    %c1_12 = arith.constant 1 : index
    %c0_13 = arith.constant 0 : index
    %c0_14 = arith.constant 0 : index
    %119 = vector.load %arg2[%c1_12, %c0_13, %c0_14] : memref<7x1x256xf32, #tpu.memory_space<vmem>>, vector<1x1x256xf32>
    %120 = vector.shape_cast %119 : vector<1x1x256xf32> to vector<1x256xf32>
    %121 = arith.mulf %115, %120 : vector<1x256xf32>
    %122 = arith.mulf %118, %120 : vector<1x256xf32>
    %cst_15 = arith.constant 0.000000e+00 : f32
    %123 = vector.broadcast %cst_15 : f32 to vector<1x1xf32>
    %124 = vector.extract_strided_slice %3 {offsets = [0, 0], sizes = [1, 255], strides = [1, 1]} : vector<1x256xf32> to vector<1x255xf32>
    %125 = tpu.concatenate %123, %124 in 1 : vector<1x1xf32>, vector<1x255xf32> -> vector<1x256xf32>
    %cst_16 = arith.constant 0.000000e+00 : f32
    %126 = vector.broadcast %cst_16 : f32 to vector<1x1xf32>
    %127 = vector.extract_strided_slice %4 {offsets = [0, 0], sizes = [1, 255], strides = [1, 1]} : vector<1x256xf32> to vector<1x255xf32>
    %128 = tpu.concatenate %126, %127 in 1 : vector<1x1xf32>, vector<1x255xf32> -> vector<1x256xf32>
    %c2_17 = arith.constant 2 : index
    %c0_18 = arith.constant 0 : index
    %c0_19 = arith.constant 0 : index
    %129 = vector.load %arg2[%c2_17, %c0_18, %c0_19] : memref<7x1x256xf32, #tpu.memory_space<vmem>>, vector<1x1x256xf32>
    %130 = vector.shape_cast %129 : vector<1x1x256xf32> to vector<1x256xf32>
    %131 = arith.mulf %125, %130 : vector<1x256xf32>
    %132 = arith.mulf %128, %130 : vector<1x256xf32>
    %cst_20 = arith.constant 0.000000e+00 : f32
    %133 = vector.broadcast %cst_20 : f32 to vector<1x1xf32>
    %134 = vector.extract_strided_slice %3 {offsets = [0, 1], sizes = [1, 255], strides = [1, 1]} : vector<1x256xf32> to vector<1x255xf32>
    %135 = tpu.concatenate %134, %133 in 1 : vector<1x255xf32>, vector<1x1xf32> -> vector<1x256xf32>
    %cst_21 = arith.constant 0.000000e+00 : f32
    %136 = vector.broadcast %cst_21 : f32 to vector<1x1xf32>
    %137 = vector.extract_strided_slice %4 {offsets = [0, 1], sizes = [1, 255], strides = [1, 1]} : vector<1x256xf32> to vector<1x255xf32>
    %138 = tpu.concatenate %137, %136 in 1 : vector<1x255xf32>, vector<1x1xf32> -> vector<1x256xf32>
    %c4_22 = arith.constant 4 : index
    %c0_23 = arith.constant 0 : index
    %c0_24 = arith.constant 0 : index
    %139 = vector.load %arg2[%c4_22, %c0_23, %c0_24] : memref<7x1x256xf32, #tpu.memory_space<vmem>>, vector<1x1x256xf32>
    %140 = vector.shape_cast %139 : vector<1x1x256xf32> to vector<1x256xf32>
    %141 = arith.mulf %135, %140 : vector<1x256xf32>
    %142 = arith.mulf %138, %140 : vector<1x256xf32>
    %cst_25 = arith.constant 0.000000e+00 : f32
    %143 = vector.broadcast %cst_25 : f32 to vector<1x2xf32>
    %144 = vector.extract_strided_slice %3 {offsets = [0, 2], sizes = [1, 254], strides = [1, 1]} : vector<1x256xf32> to vector<1x254xf32>
    %145 = tpu.concatenate %144, %143 in 1 : vector<1x254xf32>, vector<1x2xf32> -> vector<1x256xf32>
    %cst_26 = arith.constant 0.000000e+00 : f32
    %146 = vector.broadcast %cst_26 : f32 to vector<1x2xf32>
    %147 = vector.extract_strided_slice %4 {offsets = [0, 2], sizes = [1, 254], strides = [1, 1]} : vector<1x256xf32> to vector<1x254xf32>
    %148 = tpu.concatenate %147, %146 in 1 : vector<1x254xf32>, vector<1x2xf32> -> vector<1x256xf32>
    %c5_27 = arith.constant 5 : index
    %c0_28 = arith.constant 0 : index
    %c0_29 = arith.constant 0 : index
    %149 = vector.load %arg2[%c5_27, %c0_28, %c0_29] : memref<7x1x256xf32, #tpu.memory_space<vmem>>, vector<1x1x256xf32>
    %150 = vector.shape_cast %149 : vector<1x1x256xf32> to vector<1x256xf32>
    %151 = arith.mulf %145, %150 : vector<1x256xf32>
    %152 = arith.mulf %148, %150 : vector<1x256xf32>
    %cst_30 = arith.constant 0.000000e+00 : f32
    %153 = vector.broadcast %cst_30 : f32 to vector<1x3xf32>
    %154 = vector.extract_strided_slice %3 {offsets = [0, 3], sizes = [1, 253], strides = [1, 1]} : vector<1x256xf32> to vector<1x253xf32>
    %155 = tpu.concatenate %154, %153 in 1 : vector<1x253xf32>, vector<1x3xf32> -> vector<1x256xf32>
    %cst_31 = arith.constant 0.000000e+00 : f32
    %156 = vector.broadcast %cst_31 : f32 to vector<1x3xf32>
    %157 = vector.extract_strided_slice %4 {offsets = [0, 3], sizes = [1, 253], strides = [1, 1]} : vector<1x256xf32> to vector<1x253xf32>
    %158 = tpu.concatenate %157, %156 in 1 : vector<1x253xf32>, vector<1x3xf32> -> vector<1x256xf32>
    %c6_32 = arith.constant 6 : index
    %c0_33 = arith.constant 0 : index
    %c0_34 = arith.constant 0 : index
    %159 = vector.load %arg2[%c6_32, %c0_33, %c0_34] : memref<7x1x256xf32, #tpu.memory_space<vmem>>, vector<1x1x256xf32>
    %160 = vector.shape_cast %159 : vector<1x1x256xf32> to vector<1x256xf32>
    %161 = arith.mulf %155, %160 : vector<1x256xf32>
    %162 = arith.mulf %158, %160 : vector<1x256xf32>
    %cst_35 = arith.constant 0.000000e+00 : f32
    %163 = vector.broadcast %cst_35 : f32 to vector<1x256xf32>
    %cst_36 = arith.constant 0.000000e+00 : f32
    %164 = vector.broadcast %cst_36 : f32 to vector<1x256xf32>
    %cst_37 = arith.constant 0.000000e+00 : f32
    %165 = vector.broadcast %cst_37 : f32 to vector<1x256xf32>
    %cst_38 = arith.constant 0.000000e+00 : f32
    %166 = vector.broadcast %cst_38 : f32 to vector<1x256xf32>
    %167 = vector.broadcast %5 : f32 to vector<1x256xf32>
    %168 = arith.mulf %167, %111 : vector<1x256xf32>
    %169 = vector.broadcast %54 : f32 to vector<1x256xf32>
    %170 = arith.mulf %169, %112 : vector<1x256xf32>
    %171 = vector.broadcast %6 : f32 to vector<1x256xf32>
    %172 = arith.mulf %171, %121 : vector<1x256xf32>
    %173 = arith.addf %168, %172 : vector<1x256xf32>
    %174 = vector.broadcast %55 : f32 to vector<1x256xf32>
    %175 = arith.mulf %174, %122 : vector<1x256xf32>
    %176 = arith.addf %170, %175 : vector<1x256xf32>
    %177 = vector.broadcast %7 : f32 to vector<1x256xf32>
    %178 = arith.mulf %177, %131 : vector<1x256xf32>
    %179 = arith.addf %173, %178 : vector<1x256xf32>
    %180 = vector.broadcast %56 : f32 to vector<1x256xf32>
    %181 = arith.mulf %180, %132 : vector<1x256xf32>
    %182 = arith.addf %176, %181 : vector<1x256xf32>
    %183 = vector.broadcast %8 : f32 to vector<1x256xf32>
    %184 = arith.mulf %183, %3 : vector<1x256xf32>
    %185 = arith.addf %179, %184 : vector<1x256xf32>
    %186 = vector.broadcast %57 : f32 to vector<1x256xf32>
    %187 = arith.mulf %186, %4 : vector<1x256xf32>
    %188 = arith.addf %182, %187 : vector<1x256xf32>
    %189 = vector.broadcast %9 : f32 to vector<1x256xf32>
    %190 = arith.mulf %189, %141 : vector<1x256xf32>
    %191 = arith.addf %185, %190 : vector<1x256xf32>
    %192 = vector.broadcast %58 : f32 to vector<1x256xf32>
    %193 = arith.mulf %192, %142 : vector<1x256xf32>
    %194 = arith.addf %188, %193 : vector<1x256xf32>
    %195 = vector.broadcast %10 : f32 to vector<1x256xf32>
    %196 = arith.mulf %195, %151 : vector<1x256xf32>
    %197 = arith.addf %191, %196 : vector<1x256xf32>
    %198 = vector.broadcast %59 : f32 to vector<1x256xf32>
    %199 = arith.mulf %198, %152 : vector<1x256xf32>
    %200 = arith.addf %194, %199 : vector<1x256xf32>
    %201 = vector.broadcast %11 : f32 to vector<1x256xf32>
    %202 = arith.mulf %201, %161 : vector<1x256xf32>
    %203 = arith.addf %197, %202 : vector<1x256xf32>
    %204 = vector.broadcast %60 : f32 to vector<1x256xf32>
    %205 = arith.mulf %204, %162 : vector<1x256xf32>
    %206 = arith.addf %200, %205 : vector<1x256xf32>
    %207 = arith.addf %203, %206 : vector<1x256xf32>
    %cst_39 = arith.constant 0.000000e+00 : f32
    %208 = vector.broadcast %cst_39 : f32 to vector<1x48xf32>
    %209 = vector.extract_strided_slice %207 {offsets = [0, 0], sizes = [1, 208], strides = [1, 1]} : vector<1x256xf32> to vector<1x208xf32>
    %210 = tpu.concatenate %208, %209 in 1 : vector<1x48xf32>, vector<1x208xf32> -> vector<1x256xf32>
    %211 = arith.addf %163, %210 : vector<1x256xf32>
    %212 = vector.broadcast %12 : f32 to vector<1x256xf32>
    %213 = arith.mulf %212, %111 : vector<1x256xf32>
    %214 = vector.broadcast %61 : f32 to vector<1x256xf32>
    %215 = arith.mulf %214, %112 : vector<1x256xf32>
    %216 = vector.broadcast %13 : f32 to vector<1x256xf32>
    %217 = arith.mulf %216, %121 : vector<1x256xf32>
    %218 = arith.addf %213, %217 : vector<1x256xf32>
    %219 = vector.broadcast %62 : f32 to vector<1x256xf32>
    %220 = arith.mulf %219, %122 : vector<1x256xf32>
    %221 = arith.addf %215, %220 : vector<1x256xf32>
    %222 = vector.broadcast %14 : f32 to vector<1x256xf32>
    %223 = arith.mulf %222, %131 : vector<1x256xf32>
    %224 = arith.addf %218, %223 : vector<1x256xf32>
    %225 = vector.broadcast %63 : f32 to vector<1x256xf32>
    %226 = arith.mulf %225, %132 : vector<1x256xf32>
    %227 = arith.addf %221, %226 : vector<1x256xf32>
    %228 = vector.broadcast %15 : f32 to vector<1x256xf32>
    %229 = arith.mulf %228, %3 : vector<1x256xf32>
    %230 = arith.addf %224, %229 : vector<1x256xf32>
    %231 = vector.broadcast %64 : f32 to vector<1x256xf32>
    %232 = arith.mulf %231, %4 : vector<1x256xf32>
    %233 = arith.addf %227, %232 : vector<1x256xf32>
    %234 = vector.broadcast %16 : f32 to vector<1x256xf32>
    %235 = arith.mulf %234, %141 : vector<1x256xf32>
    %236 = arith.addf %230, %235 : vector<1x256xf32>
    %237 = vector.broadcast %65 : f32 to vector<1x256xf32>
    %238 = arith.mulf %237, %142 : vector<1x256xf32>
    %239 = arith.addf %233, %238 : vector<1x256xf32>
    %240 = vector.broadcast %17 : f32 to vector<1x256xf32>
    %241 = arith.mulf %240, %151 : vector<1x256xf32>
    %242 = arith.addf %236, %241 : vector<1x256xf32>
    %243 = vector.broadcast %66 : f32 to vector<1x256xf32>
    %244 = arith.mulf %243, %152 : vector<1x256xf32>
    %245 = arith.addf %239, %244 : vector<1x256xf32>
    %246 = vector.broadcast %18 : f32 to vector<1x256xf32>
    %247 = arith.mulf %246, %161 : vector<1x256xf32>
    %248 = arith.addf %242, %247 : vector<1x256xf32>
    %249 = vector.broadcast %67 : f32 to vector<1x256xf32>
    %250 = arith.mulf %249, %162 : vector<1x256xf32>
    %251 = arith.addf %245, %250 : vector<1x256xf32>
    %252 = arith.addf %248, %251 : vector<1x256xf32>
    %cst_40 = arith.constant 0.000000e+00 : f32
    %253 = vector.broadcast %cst_40 : f32 to vector<1x32xf32>
    %254 = vector.extract_strided_slice %252 {offsets = [0, 0], sizes = [1, 224], strides = [1, 1]} : vector<1x256xf32> to vector<1x224xf32>
    %255 = tpu.concatenate %253, %254 in 1 : vector<1x32xf32>, vector<1x224xf32> -> vector<1x256xf32>
    %256 = arith.addf %164, %255 : vector<1x256xf32>
    %257 = vector.broadcast %19 : f32 to vector<1x256xf32>
    %258 = arith.mulf %257, %111 : vector<1x256xf32>
    %259 = vector.broadcast %68 : f32 to vector<1x256xf32>
    %260 = arith.mulf %259, %112 : vector<1x256xf32>
    %261 = vector.broadcast %20 : f32 to vector<1x256xf32>
    %262 = arith.mulf %261, %121 : vector<1x256xf32>
    %263 = arith.addf %258, %262 : vector<1x256xf32>
    %264 = vector.broadcast %69 : f32 to vector<1x256xf32>
    %265 = arith.mulf %264, %122 : vector<1x256xf32>
    %266 = arith.addf %260, %265 : vector<1x256xf32>
    %267 = vector.broadcast %21 : f32 to vector<1x256xf32>
    %268 = arith.mulf %267, %131 : vector<1x256xf32>
    %269 = arith.addf %263, %268 : vector<1x256xf32>
    %270 = vector.broadcast %70 : f32 to vector<1x256xf32>
    %271 = arith.mulf %270, %132 : vector<1x256xf32>
    %272 = arith.addf %266, %271 : vector<1x256xf32>
    %273 = vector.broadcast %22 : f32 to vector<1x256xf32>
    %274 = arith.mulf %273, %3 : vector<1x256xf32>
    %275 = arith.addf %269, %274 : vector<1x256xf32>
    %276 = vector.broadcast %71 : f32 to vector<1x256xf32>
    %277 = arith.mulf %276, %4 : vector<1x256xf32>
    %278 = arith.addf %272, %277 : vector<1x256xf32>
    %279 = vector.broadcast %23 : f32 to vector<1x256xf32>
    %280 = arith.mulf %279, %141 : vector<1x256xf32>
    %281 = arith.addf %275, %280 : vector<1x256xf32>
    %282 = vector.broadcast %72 : f32 to vector<1x256xf32>
    %283 = arith.mulf %282, %142 : vector<1x256xf32>
    %284 = arith.addf %278, %283 : vector<1x256xf32>
    %285 = vector.broadcast %24 : f32 to vector<1x256xf32>
    %286 = arith.mulf %285, %151 : vector<1x256xf32>
    %287 = arith.addf %281, %286 : vector<1x256xf32>
    %288 = vector.broadcast %73 : f32 to vector<1x256xf32>
    %289 = arith.mulf %288, %152 : vector<1x256xf32>
    %290 = arith.addf %284, %289 : vector<1x256xf32>
    %291 = vector.broadcast %25 : f32 to vector<1x256xf32>
    %292 = arith.mulf %291, %161 : vector<1x256xf32>
    %293 = arith.addf %287, %292 : vector<1x256xf32>
    %294 = vector.broadcast %74 : f32 to vector<1x256xf32>
    %295 = arith.mulf %294, %162 : vector<1x256xf32>
    %296 = arith.addf %290, %295 : vector<1x256xf32>
    %297 = arith.addf %293, %296 : vector<1x256xf32>
    %cst_41 = arith.constant 0.000000e+00 : f32
    %298 = vector.broadcast %cst_41 : f32 to vector<1x16xf32>
    %299 = vector.extract_strided_slice %297 {offsets = [0, 0], sizes = [1, 240], strides = [1, 1]} : vector<1x256xf32> to vector<1x240xf32>
    %300 = tpu.concatenate %298, %299 in 1 : vector<1x16xf32>, vector<1x240xf32> -> vector<1x256xf32>
    %301 = arith.addf %165, %300 : vector<1x256xf32>
    %302 = vector.broadcast %26 : f32 to vector<1x256xf32>
    %303 = arith.mulf %302, %111 : vector<1x256xf32>
    %304 = vector.broadcast %75 : f32 to vector<1x256xf32>
    %305 = arith.mulf %304, %112 : vector<1x256xf32>
    %306 = vector.broadcast %27 : f32 to vector<1x256xf32>
    %307 = arith.mulf %306, %121 : vector<1x256xf32>
    %308 = arith.addf %303, %307 : vector<1x256xf32>
    %309 = vector.broadcast %76 : f32 to vector<1x256xf32>
    %310 = arith.mulf %309, %122 : vector<1x256xf32>
    %311 = arith.addf %305, %310 : vector<1x256xf32>
    %312 = vector.broadcast %28 : f32 to vector<1x256xf32>
    %313 = arith.mulf %312, %131 : vector<1x256xf32>
    %314 = arith.addf %308, %313 : vector<1x256xf32>
    %315 = vector.broadcast %77 : f32 to vector<1x256xf32>
    %316 = arith.mulf %315, %132 : vector<1x256xf32>
    %317 = arith.addf %311, %316 : vector<1x256xf32>
    %318 = vector.broadcast %29 : f32 to vector<1x256xf32>
    %319 = arith.mulf %318, %3 : vector<1x256xf32>
    %320 = arith.addf %314, %319 : vector<1x256xf32>
    %321 = vector.broadcast %78 : f32 to vector<1x256xf32>
    %322 = arith.mulf %321, %4 : vector<1x256xf32>
    %323 = arith.addf %317, %322 : vector<1x256xf32>
    %324 = vector.broadcast %30 : f32 to vector<1x256xf32>
    %325 = arith.mulf %324, %141 : vector<1x256xf32>
    %326 = arith.addf %320, %325 : vector<1x256xf32>
    %327 = vector.broadcast %79 : f32 to vector<1x256xf32>
    %328 = arith.mulf %327, %142 : vector<1x256xf32>
    %329 = arith.addf %323, %328 : vector<1x256xf32>
    %330 = vector.broadcast %31 : f32 to vector<1x256xf32>
    %331 = arith.mulf %330, %151 : vector<1x256xf32>
    %332 = arith.addf %326, %331 : vector<1x256xf32>
    %333 = vector.broadcast %80 : f32 to vector<1x256xf32>
    %334 = arith.mulf %333, %152 : vector<1x256xf32>
    %335 = arith.addf %329, %334 : vector<1x256xf32>
    %336 = vector.broadcast %32 : f32 to vector<1x256xf32>
    %337 = arith.mulf %336, %161 : vector<1x256xf32>
    %338 = arith.addf %332, %337 : vector<1x256xf32>
    %339 = vector.broadcast %81 : f32 to vector<1x256xf32>
    %340 = arith.mulf %339, %162 : vector<1x256xf32>
    %341 = arith.addf %335, %340 : vector<1x256xf32>
    %342 = arith.addf %338, %341 : vector<1x256xf32>
    %343 = arith.addf %166, %342 : vector<1x256xf32>
    %344 = vector.broadcast %33 : f32 to vector<1x256xf32>
    %345 = arith.mulf %344, %111 : vector<1x256xf32>
    %346 = vector.broadcast %82 : f32 to vector<1x256xf32>
    %347 = arith.mulf %346, %112 : vector<1x256xf32>
    %348 = vector.broadcast %34 : f32 to vector<1x256xf32>
    %349 = arith.mulf %348, %121 : vector<1x256xf32>
    %350 = arith.addf %345, %349 : vector<1x256xf32>
    %351 = vector.broadcast %83 : f32 to vector<1x256xf32>
    %352 = arith.mulf %351, %122 : vector<1x256xf32>
    %353 = arith.addf %347, %352 : vector<1x256xf32>
    %354 = vector.broadcast %35 : f32 to vector<1x256xf32>
    %355 = arith.mulf %354, %131 : vector<1x256xf32>
    %356 = arith.addf %350, %355 : vector<1x256xf32>
    %357 = vector.broadcast %84 : f32 to vector<1x256xf32>
    %358 = arith.mulf %357, %132 : vector<1x256xf32>
    %359 = arith.addf %353, %358 : vector<1x256xf32>
    %360 = vector.broadcast %36 : f32 to vector<1x256xf32>
    %361 = arith.mulf %360, %3 : vector<1x256xf32>
    %362 = arith.addf %356, %361 : vector<1x256xf32>
    %363 = vector.broadcast %85 : f32 to vector<1x256xf32>
    %364 = arith.mulf %363, %4 : vector<1x256xf32>
    %365 = arith.addf %359, %364 : vector<1x256xf32>
    %366 = vector.broadcast %37 : f32 to vector<1x256xf32>
    %367 = arith.mulf %366, %141 : vector<1x256xf32>
    %368 = arith.addf %362, %367 : vector<1x256xf32>
    %369 = vector.broadcast %86 : f32 to vector<1x256xf32>
    %370 = arith.mulf %369, %142 : vector<1x256xf32>
    %371 = arith.addf %365, %370 : vector<1x256xf32>
    %372 = vector.broadcast %38 : f32 to vector<1x256xf32>
    %373 = arith.mulf %372, %151 : vector<1x256xf32>
    %374 = arith.addf %368, %373 : vector<1x256xf32>
    %375 = vector.broadcast %87 : f32 to vector<1x256xf32>
    %376 = arith.mulf %375, %152 : vector<1x256xf32>
    %377 = arith.addf %371, %376 : vector<1x256xf32>
    %378 = vector.broadcast %39 : f32 to vector<1x256xf32>
    %379 = arith.mulf %378, %161 : vector<1x256xf32>
    %380 = arith.addf %374, %379 : vector<1x256xf32>
    %381 = vector.broadcast %88 : f32 to vector<1x256xf32>
    %382 = arith.mulf %381, %162 : vector<1x256xf32>
    %383 = arith.addf %377, %382 : vector<1x256xf32>
    %384 = arith.addf %380, %383 : vector<1x256xf32>
    %cst_42 = arith.constant 0.000000e+00 : f32
    %385 = vector.broadcast %cst_42 : f32 to vector<1x16xf32>
    %386 = vector.extract_strided_slice %384 {offsets = [0, 16], sizes = [1, 240], strides = [1, 1]} : vector<1x256xf32> to vector<1x240xf32>
    %387 = tpu.concatenate %386, %385 in 1 : vector<1x240xf32>, vector<1x16xf32> -> vector<1x256xf32>
    %388 = arith.addf %211, %387 : vector<1x256xf32>
    %389 = vector.broadcast %40 : f32 to vector<1x256xf32>
    %390 = arith.mulf %389, %111 : vector<1x256xf32>
    %391 = vector.broadcast %89 : f32 to vector<1x256xf32>
    %392 = arith.mulf %391, %112 : vector<1x256xf32>
    %393 = vector.broadcast %41 : f32 to vector<1x256xf32>
    %394 = arith.mulf %393, %121 : vector<1x256xf32>
    %395 = arith.addf %390, %394 : vector<1x256xf32>
    %396 = vector.broadcast %90 : f32 to vector<1x256xf32>
    %397 = arith.mulf %396, %122 : vector<1x256xf32>
    %398 = arith.addf %392, %397 : vector<1x256xf32>
    %399 = vector.broadcast %42 : f32 to vector<1x256xf32>
    %400 = arith.mulf %399, %131 : vector<1x256xf32>
    %401 = arith.addf %395, %400 : vector<1x256xf32>
    %402 = vector.broadcast %91 : f32 to vector<1x256xf32>
    %403 = arith.mulf %402, %132 : vector<1x256xf32>
    %404 = arith.addf %398, %403 : vector<1x256xf32>
    %405 = vector.broadcast %43 : f32 to vector<1x256xf32>
    %406 = arith.mulf %405, %3 : vector<1x256xf32>
    %407 = arith.addf %401, %406 : vector<1x256xf32>
    %408 = vector.broadcast %92 : f32 to vector<1x256xf32>
    %409 = arith.mulf %408, %4 : vector<1x256xf32>
    %410 = arith.addf %404, %409 : vector<1x256xf32>
    %411 = vector.broadcast %44 : f32 to vector<1x256xf32>
    %412 = arith.mulf %411, %141 : vector<1x256xf32>
    %413 = arith.addf %407, %412 : vector<1x256xf32>
    %414 = vector.broadcast %93 : f32 to vector<1x256xf32>
    %415 = arith.mulf %414, %142 : vector<1x256xf32>
    %416 = arith.addf %410, %415 : vector<1x256xf32>
    %417 = vector.broadcast %45 : f32 to vector<1x256xf32>
    %418 = arith.mulf %417, %151 : vector<1x256xf32>
    %419 = arith.addf %413, %418 : vector<1x256xf32>
    %420 = vector.broadcast %94 : f32 to vector<1x256xf32>
    %421 = arith.mulf %420, %152 : vector<1x256xf32>
    %422 = arith.addf %416, %421 : vector<1x256xf32>
    %423 = vector.broadcast %46 : f32 to vector<1x256xf32>
    %424 = arith.mulf %423, %161 : vector<1x256xf32>
    %425 = arith.addf %419, %424 : vector<1x256xf32>
    %426 = vector.broadcast %95 : f32 to vector<1x256xf32>
    %427 = arith.mulf %426, %162 : vector<1x256xf32>
    %428 = arith.addf %422, %427 : vector<1x256xf32>
    %429 = arith.addf %425, %428 : vector<1x256xf32>
    %cst_43 = arith.constant 0.000000e+00 : f32
    %430 = vector.broadcast %cst_43 : f32 to vector<1x32xf32>
    %431 = vector.extract_strided_slice %429 {offsets = [0, 32], sizes = [1, 224], strides = [1, 1]} : vector<1x256xf32> to vector<1x224xf32>
    %432 = tpu.concatenate %431, %430 in 1 : vector<1x224xf32>, vector<1x32xf32> -> vector<1x256xf32>
    %433 = arith.addf %256, %432 : vector<1x256xf32>
    %434 = vector.broadcast %47 : f32 to vector<1x256xf32>
    %435 = arith.mulf %434, %111 : vector<1x256xf32>
    %436 = vector.broadcast %96 : f32 to vector<1x256xf32>
    %437 = arith.mulf %436, %112 : vector<1x256xf32>
    %438 = vector.broadcast %48 : f32 to vector<1x256xf32>
    %439 = arith.mulf %438, %121 : vector<1x256xf32>
    %440 = arith.addf %435, %439 : vector<1x256xf32>
    %441 = vector.broadcast %97 : f32 to vector<1x256xf32>
    %442 = arith.mulf %441, %122 : vector<1x256xf32>
    %443 = arith.addf %437, %442 : vector<1x256xf32>
    %444 = vector.broadcast %49 : f32 to vector<1x256xf32>
    %445 = arith.mulf %444, %131 : vector<1x256xf32>
    %446 = arith.addf %440, %445 : vector<1x256xf32>
    %447 = vector.broadcast %98 : f32 to vector<1x256xf32>
    %448 = arith.mulf %447, %132 : vector<1x256xf32>
    %449 = arith.addf %443, %448 : vector<1x256xf32>
    %450 = vector.broadcast %50 : f32 to vector<1x256xf32>
    %451 = arith.mulf %450, %3 : vector<1x256xf32>
    %452 = arith.addf %446, %451 : vector<1x256xf32>
    %453 = vector.broadcast %99 : f32 to vector<1x256xf32>
    %454 = arith.mulf %453, %4 : vector<1x256xf32>
    %455 = arith.addf %449, %454 : vector<1x256xf32>
    %456 = vector.broadcast %51 : f32 to vector<1x256xf32>
    %457 = arith.mulf %456, %141 : vector<1x256xf32>
    %458 = arith.addf %452, %457 : vector<1x256xf32>
    %459 = vector.broadcast %100 : f32 to vector<1x256xf32>
    %460 = arith.mulf %459, %142 : vector<1x256xf32>
    %461 = arith.addf %455, %460 : vector<1x256xf32>
    %462 = vector.broadcast %52 : f32 to vector<1x256xf32>
    %463 = arith.mulf %462, %151 : vector<1x256xf32>
    %464 = arith.addf %458, %463 : vector<1x256xf32>
    %465 = vector.broadcast %101 : f32 to vector<1x256xf32>
    %466 = arith.mulf %465, %152 : vector<1x256xf32>
    %467 = arith.addf %461, %466 : vector<1x256xf32>
    %468 = vector.broadcast %53 : f32 to vector<1x256xf32>
    %469 = arith.mulf %468, %161 : vector<1x256xf32>
    %470 = arith.addf %464, %469 : vector<1x256xf32>
    %471 = vector.broadcast %102 : f32 to vector<1x256xf32>
    %472 = arith.mulf %471, %162 : vector<1x256xf32>
    %473 = arith.addf %467, %472 : vector<1x256xf32>
    %474 = arith.addf %470, %473 : vector<1x256xf32>
    %cst_44 = arith.constant 0.000000e+00 : f32
    %475 = vector.broadcast %cst_44 : f32 to vector<1x48xf32>
    %476 = vector.extract_strided_slice %474 {offsets = [0, 48], sizes = [1, 208], strides = [1, 1]} : vector<1x256xf32> to vector<1x208xf32>
    %477 = tpu.concatenate %476, %475 in 1 : vector<1x208xf32>, vector<1x48xf32> -> vector<1x256xf32>
    %478 = arith.addf %301, %477 : vector<1x256xf32>
    %479 = arith.addf %388, %433 : vector<1x256xf32>
    %480 = arith.addf %478, %343 : vector<1x256xf32>
    %481 = arith.addf %479, %480 : vector<1x256xf32>
    %482 = arith.negf %481 : vector<1x256xf32>
    %483 = math.exp %482 : vector<1x256xf32>
    %cst_45 = arith.constant 1.000000e+00 : f32
    %484 = vector.broadcast %cst_45 : f32 to vector<1x256xf32>
    %485 = arith.addf %484, %483 : vector<1x256xf32>
    %486 = arith.divf %484, %485 : vector<1x256xf32>
    %c0_46 = arith.constant 0 : index
    %c0_47 = arith.constant 0 : index
    %c0_48 = arith.constant 0 : index
    %487 = vector.load %arg3[%c0_46, %c0_47, %c0_48] : memref<1x32x256xf32, #tpu.memory_space<vmem>>, vector<1x32x256xf32>
    %488 = vector.shape_cast %486 : vector<1x256xf32> to vector<1x1x256xf32>
    %489 = vector.broadcast %488 : vector<1x1x256xf32> to vector<1x32x256xf32>
    %490 = arith.mulf %487, %489 : vector<1x32x256xf32>
    %c0_49 = arith.constant 0 : index
    %c0_50 = arith.constant 0 : index
    %c0_51 = arith.constant 0 : index
    %491 = vector.load %arg5[%c0_49, %c0_50, %c0_51] : memref<1x32x256xf32, #tpu.memory_space<vmem>>, vector<1x32x256xf32>
    tpu.vector_store %arg5[%c0_49, %c0_50, %c0_51], %490 {strides = array<i32>} : memref<1x32x256xf32, #tpu.memory_space<vmem>>, vector<1x32x256xf32>,
    return
  }
  func.func @transform_0(%arg0: i32) -> i32 {
    %c0_i32 = arith.constant 0 : i32
    %c0_i32_0 = arith.constant 0 : i32
    return %c0_i32 : i32
  }
  func.func @transform_1(%arg0: i32) -> (i32, i32, i32) {
    %c0_i32 = arith.constant 0 : i32
    %c0_i32_0 = arith.constant 0 : i32
    %c0_i32_1 = arith.constant 0 : i32
    %c0_i32_2 = arith.constant 0 : i32
    return %c0_i32, %c0_i32_0, %c0_i32_1 : i32, i32, i32
  }
  func.func @transform_2(%arg0: i32) -> (i32, i32, i32) {
    %c0_i32 = arith.constant 0 : i32
    %c0_i32_0 = arith.constant 0 : i32
    %c0_i32_1 = arith.constant 0 : i32
    return %arg0, %c0_i32, %c0_i32_0 : i32, i32, i32
  }
  func.func @transform_3(%arg0: i32) -> (i32, i32, i32) {
    %c0_i32 = arith.constant 0 : i32
    %c0_i32_0 = arith.constant 0 : i32
    %c0_i32_1 = arith.constant 0 : i32
    return %arg0, %c0_i32, %c0_i32_0 : i32, i32, i32
  }
  func.func @transform_4(%arg0: i32) -> (i32, i32, i32) {
    %c0_i32 = arith.constant 0 : i32
    %c0_i32_0 = arith.constant 0 : i32
    %c0_i32_1 = arith.constant 0 : i32
    return %arg0, %c0_i32, %c0_i32_0 : i32, i32, i32
  }
}

</mosaic_0001>

<llo_original>
// kernel: sa_forward.1
$region0: #{sa_forward.1}
  #allocation0 [shape = 'u32[]', space=smem, size = 0x4, offset = 0x4, fixed_abs, tag = 'smem constant byte address 0x4 - core index']
  #allocation1 [shape = 'u32[144,128]{1,0:T(1,128)}', space=vmem, size = 0x12000, scoped, tag = 'internal scratch']
  %s0 = inlined_call_operand.vmem [shape: f32[98], index: 0, kind: input, shape index: {}]
  %s1 = inlined_call_operand.vmem [shape: f32[7,1,256], index: 1, kind: input, shape index: {}]
  %s2 = inlined_call_operand.vmem [shape: f32[2,32,256], index: 2, kind: input, shape index: {}]
  %s3 = inlined_call_operand.vmem [shape: f32[2,32,256], index: 3, kind: input, shape index: {}]
  %s4 = inlined_call_operand.vmem [shape: f32[2,32,256], index: 4, kind: output, shape index: {}]
  %s5 = sld [smem:[#allocation0]]
  $region53: #{sa_forward.1} parent=0
    _
  %s7 = ssub.s32 1, %s5
  %s8 = scalar_select 0, %s7, %s5
  $region1: #{sa_forward.1} parent=0
    #allocation2 [shape = 'u8[512]{0}', space=smem, size = 0x200, scoped, tag = 'input window, operand 0, single buffered']
    #allocation3 [shape = 's32[2]{0}', space=sflag, size = 0x8, scoped, tag = 'scoped memory for sa_forward.1']
    %9 = vsyncpa [#allocation3], 0
    loop: start=0, step=1, limit=4
    $region2: #{sa_forward.1} parent=1 // loop_pre_header
      _
    $region3: #{sa_forward.1} parent=1 // loop_header
      %s11 = sphi 0, %s15
      %p12 = scmp.ge.s32.totalorder %s11, 4
      %s19 = sphi 0, %s19
      %s21 = sphi 0, %s19
      %s22 = sphi 0, %s21
      %s36 = sphi 0, %s22
      %s40 = sphi 0, %s40
      %s42 = sphi 0, %s40
      %s43 = sphi 0, %s42
      %s57 = sphi 0, %s43
      %s63 = sphi 0, %s65
      %s66 = sphi 0, %s63
      %s67 = sphi 0, %s66
      %s83 = sphi 0, %s67
      %s89 = sphi 0, %s91
      %s92 = sphi 0, %s89
      %s93 = sphi 0, %s92
      %s109 = sphi 0, %s93
      %s115 = sphi 0, %s117
      %s118 = sphi 0, %s115
      %s119 = sphi 0, %s118
      %s135 = sphi 0, %s119
    $region4: #{sa_forward.1} parent=1 // loop_header_branch
      %14 = sbr.rel (%p12) target = $region8
    $region5: #{sa_forward.1} parent=1 // loop_body
      %s16 = ssub.s32 %s11, 1
      %s17 = ssub.s32 %s11, 2
      %s18 = sadd.s32 %s11, 1
      %s20 = sadd.s32 %s19, 1
      %p23 = scmp.eq.s32.totalorder %s11, 1
      %p24 = scmp.ne.s32.totalorder %s19, %s21
      %p25 = scmp.eq.s32.totalorder %s11, 0
      %p26 = por %p24, %p25
      %p27 = scmp.ne.s32.totalorder %s19, %s21
      %p28 = scmp.eq.s32.totalorder %s16, 1
      %p29 = por %p27, %p28
      %p30 = scmp.ne.s32.totalorder %s21, %s22
      %p31 = scmp.eq.s32.totalorder %s16, 0
      %p32 = por %p30, %p31
      %p33 = scmp.ne.s32.totalorder %s21, %s22
      %p34 = scmp.eq.s32.totalorder %s17, 1
      %p35 = por %p33, %p34
      %p37 = scmp.ne.s32.totalorder %s22, %s36
      %p38 = scmp.eq.s32.totalorder %s17, 0
      %p39 = por %p37, %p38
      %s41 = sadd.s32 %s40, 1
      %p44 = scmp.eq.s32.totalorder %s11, 1
      %p45 = scmp.ne.s32.totalorder %s40, %s42
      %p46 = scmp.eq.s32.totalorder %s11, 0
      %p47 = por %p45, %p46
      %p48 = scmp.ne.s32.totalorder %s40, %s42
      %p49 = scmp.eq.s32.totalorder %s16, 1
      %p50 = por %p48, %p49
      %p51 = scmp.ne.s32.totalorder %s42, %s43
      %p52 = scmp.eq.s32.totalorder %s16, 0
      %p53 = por %p51, %p52
      %p54 = scmp.ne.s32.totalorder %s42, %s43
      %p55 = scmp.eq.s32.totalorder %s17, 1
      %p56 = por %p54, %p55
      %p58 = scmp.ne.s32.totalorder %s43, %s57
      %p59 = scmp.eq.s32.totalorder %s17, 0
      %p60 = por %p58, %p59
      %s61 = ssub.s32 %s11, %s18
      %p62 = scmp.eq.s32.totalorder %s61, 0
      %s64 = sadd.s32 %s63, 1
      %s65 = scalar_select %p62, %s63, %s64
      %p68 = pneg %p62
      %p69 = scmp.eq.s32.totalorder %s11, 1
      %p70 = por %p68, %p69
      %p71 = scmp.ne.s32.totalorder %s63, %s66
      %p72 = scmp.eq.s32.totalorder %s11, 0
      %p73 = por %p71, %p72
      %p74 = scmp.ne.s32.totalorder %s63, %s66
      %p75 = scmp.eq.s32.totalorder %s16, 1
      %p76 = por %p74, %p75
      %p77 = scmp.ne.s32.totalorder %s66, %s67
      %p78 = scmp.eq.s32.totalorder %s16, 0
      %p79 = por %p77, %p78
      %p80 = scmp.ne.s32.totalorder %s66, %s67
      %p81 = scmp.eq.s32.totalorder %s17, 1
      %p82 = por %p80, %p81
      %p84 = scmp.ne.s32.totalorder %s67, %s83
      %p85 = scmp.eq.s32.totalorder %s17, 0
      %p86 = por %p84, %p85
      %s87 = ssub.s32 %s11, %s18
      %p88 = scmp.eq.s32.totalorder %s87, 0
      %s90 = sadd.s32 %s89, 1
      %s91 = scalar_select %p88, %s89, %s90
      %p94 = pneg %p88
      %p95 = scmp.eq.s32.totalorder %s11, 1
      %p96 = por %p94, %p95
      %p97 = scmp.ne.s32.totalorder %s89, %s92
      %p98 = scmp.eq.s32.totalorder %s11, 0
      %p99 = por %p97, %p98
      %p100 = scmp.ne.s32.totalorder %s89, %s92
      %p101 = scmp.eq.s32.totalorder %s16, 1
      %p102 = por %p100, %p101
      %p103 = scmp.ne.s32.totalorder %s92, %s93
      %p104 = scmp.eq.s32.totalorder %s16, 0
      %p105 = por %p103, %p104
      %p106 = scmp.ne.s32.totalorder %s92, %s93
      %p107 = scmp.eq.s32.totalorder %s17, 1
      %p108 = por %p106, %p107
      %p110 = scmp.ne.s32.totalorder %s93, %s109
      %p111 = scmp.eq.s32.totalorder %s17, 0
      %p112 = por %p110, %p111
      %s113 = ssub.s32 %s11, %s18
      %p114 = scmp.eq.s32.totalorder %s113, 0
      %s116 = sadd.s32 %s115, 1
      %s117 = scalar_select %p114, %s115, %s116
      %p120 = pneg %p114
      %p121 = scmp.eq.s32.totalorder %s11, 1
      %p122 = por %p120, %p121
      %p123 = scmp.ne.s32.totalorder %s115, %s118
      %p124 = scmp.eq.s32.totalorder %s11, 0
      %p125 = por %p123, %p124
      %p126 = scmp.ne.s32.totalorder %s115, %s118
      %p127 = scmp.eq.s32.totalorder %s16, 1
      %p128 = por %p126, %p127
      %p129 = scmp.ne.s32.totalorder %s118, %s119
      %p130 = scmp.eq.s32.totalorder %s16, 0
      %p131 = por %p129, %p130
      %p132 = scmp.ne.s32.totalorder %s118, %s119
      %p133 = scmp.eq.s32.totalorder %s17, 1
      %p134 = por %p132, %p133
      %p136 = scmp.ne.s32.totalorder %s119, %s135
      %p137 = scmp.eq.s32.totalorder %s17, 0
      %p138 = por %p136, %p137
      %p139 = scmp.le.s32.totalorder 1, %s11
      %p140 = scmp.lt.s32.totalorder %s11, 3
      %p141 = pnand %p139, %p140
      %p142 = pneg %p141
      // Predicated region
      $region9: #{sa_forward.1} parent=5 // pred_check
        _
      $region10: #{sa_forward.1} parent=5 // pred_check_branch
        %144 = sbr.rel (%p141) target = $region12
      $region11: #{sa_forward.1} parent=5 // pred_region
        %s145 = ssub.s32 %s11, 1
        // Predicated region
        $region13: #{sa_forward.1} parent=11 // pred_check
          %p146 = pneg %p32
        $region14: #{sa_forward.1} parent=11 // pred_check_branch
          %148 = sbr.rel (%p146) target = $region16
        $region15: #{sa_forward.1} parent=11 // pred_region
          %s150 = ssub.s32 16, 16
          %151 = vsyncadd [#allocation3], %s150
          %s153 = sshll.u32 %s0, 4
          %s154 = int_to_ptr.vmem [resolvable:$true] %s153
          %156 = dma.vmem_to_smem %s154, 16, [#allocation2], [#allocation3]
        $region16: #{sa_forward.1} parent=11 // pred_fallthru
          _
        // Predicated region
        $region17: #{sa_forward.1} parent=11 // pred_check
          %p157 = pneg %p53
        $region18: #{sa_forward.1} parent=11 // pred_check_branch
          %159 = sbr.rel (%p157) target = $region20
        $region19: #{sa_forward.1} parent=11 // pred_region
          _
        $region20: #{sa_forward.1} parent=11 // pred_fallthru
          _
      $region12: #{sa_forward.1} parent=5 // pred_fallthru
        _
      %p160 = scmp.lt.s32.totalorder %s11, 2
      // Predicated region
      $region21: #{sa_forward.1} parent=5 // pred_check
        %p161 = pneg %p160
      $region22: #{sa_forward.1} parent=5 // pred_check_branch
        %163 = sbr.rel (%p161) target = $region24
      $region23: #{sa_forward.1} parent=5 // pred_region
        // Predicated region
        $region25: #{sa_forward.1} parent=23 // pred_check
          %p164 = pneg %p73
        $region26: #{sa_forward.1} parent=23 // pred_check_branch
          %166 = sbr.rel (%p164) target = $region28
        $region27: #{sa_forward.1} parent=23 // pred_region
          %p167 = scmp.lt.s32.totalorder %s11, 1
          %s168 = scalar_select %p167, %s11, 1
          %s169 = smul.addr %s168, 8
          %s170 = smul.addr %s169, 8
          %s171 = scalar_lea.vmem %s2, %s170
        $region28: #{sa_forward.1} parent=23 // pred_fallthru
          _
        // Predicated region
        $region29: #{sa_forward.1} parent=23 // pred_check
          %p172 = pneg %p99
        $region30: #{sa_forward.1} parent=23 // pred_check_branch
          %174 = sbr.rel (%p172) target = $region32
        $region31: #{sa_forward.1} parent=23 // pred_region
          %p175 = scmp.lt.s32.totalorder %s11, 1
          %s176 = scalar_select %p175, %s11, 1
          %s177 = smul.addr %s176, 8
          %s178 = smul.addr %s177, 8
          %s179 = scalar_lea.vmem %s3, %s178
        $region32: #{sa_forward.1} parent=23 // pred_fallthru
          _
      $region24: #{sa_forward.1} parent=5 // pred_fallthru
        _
      %p180 = scmp.le.s32.totalorder 1, %s11
      %p181 = scmp.lt.s32.totalorder %s11, 3
      %p182 = pnand %p180, %p181
      %p183 = pneg %p182
      // Predicated region
      $region33: #{sa_forward.1} parent=5 // pred_check
        _
      $region34: #{sa_forward.1} parent=5 // pred_check_branch
        %185 = sbr.rel (%p182) target = $region36
      $region35: #{sa_forward.1} parent=5 // pred_region
        %s186 = ssub.s32 %s11, 1
        // Predicated region
        $region37: #{sa_forward.1} parent=35 // pred_check
          %p187 = pneg %p32
        $region38: #{sa_forward.1} parent=35 // pred_check_branch
          %189 = sbr.rel (%p187) target = $region40
        $region39: #{sa_forward.1} parent=35 // pred_region
          %190 = dma.done [#allocation3], 16
        $region40: #{sa_forward.1} parent=35 // pred_fallthru
          _
        %191 = sfence
        %p192 = pneg %p32
        %p193 = pneg %p29
        %p194 = pneg %p53
        %p195 = pneg %p50
        %p196 = scmp.lt.s32.totalorder %s16, 1
        %s197 = scalar_select %p196, %s16, 1
        %s198 = smul.addr %s197, 8
        %s199 = smul.addr %s198, 8
        %s200 = scalar_lea.vmem %s2, %s199
        %p201 = pneg %p79
        %p202 = pneg %p76
        %p203 = scmp.lt.s32.totalorder %s16, 1
        %s204 = scalar_select %p203, %s16, 1
        %s205 = smul.addr %s204, 8
        %s206 = smul.addr %s205, 8
        %s207 = scalar_lea.vmem %s3, %s206
        %p208 = pneg %p105
        %p209 = pneg %p102
        %p210 = pneg %p131
        %p211 = pneg %p128
        %p212 = scmp.lt.s32.totalorder %s16, 1
        %s213 = scalar_select %p212, %s16, 1
        %s214 = smul.addr %s213, 8
        %s215 = smul.addr %s214, 8
        %s216 = scalar_lea.vmem %s4, %s215
        %p217 = scmp.lt.s32.totalorder %s16, 1
        %s218 = scalar_select %p217, %s16, 1
        %s219 = smul.addr %s218, 8
        %s220 = smul.addr %s219, 8
        %s221 = scalar_lea.vmem %s2, %s220
        %p222 = scmp.lt.s32.totalorder %s16, 1
        %s223 = scalar_select %p222, %s16, 1
        %s224 = smul.addr %s223, 8
        %s225 = smul.addr %s224, 8
        %s226 = scalar_lea.vmem %s3, %s225
        %p227 = scmp.lt.s32.totalorder %s16, 1
        %s228 = scalar_select %p227, %s16, 1
        %s229 = smul.addr %s228, 8
        %s230 = smul.addr %s229, 8
        %s231 = scalar_lea.vmem %s4, %s230
        %v232 = vld [vmem:[%s226] sm:$0xff]
        %v233 = vld [vmem:[%s226 + $0x8] sm:$0xff]
        %v234 = vld [vmem:[%s226 + $0x10] sm:$0xff]
        %v235 = vld [vmem:[%s226 + $0x18] sm:$0xff]
        %v236 = vld [vmem:[%s226 + $0x20] sm:$0xff]
        %v237 = vld [vmem:[%s226 + $0x28] sm:$0xff]
        %v238 = vld [vmem:[%s226 + $0x30] sm:$0xff]
        %v239 = vld [vmem:[%s226 + $0x38] sm:$0xff]
        %v240 = vadd.f32 %v232, %v234
        %v241 = vadd.f32 %v240, %v236
        %v242 = vadd.f32 %v241, %v238
        %v243 = vrot.slane %v242, 4
        %v244 = vadd.f32 %v242, %v243
        %v245 = vrot.slane %v244, 2
        %v246 = vadd.f32 %v244, %v245
        %v247 = vrot.slane %v246, 1
        %v248 = vadd.f32 %v246, %v247
        %v249 = vadd.f32 %v233, %v235
        %v250 = vadd.f32 %v249, %v237
        %v251 = vadd.f32 %v250, %v239
        %v252 = vrot.slane %v251, 4
        %v253 = vadd.f32 %v251, %v252
        %v254 = vrot.slane %v253, 2
        %v255 = vadd.f32 %v253, %v254
        %v256 = vrot.slane %v255, 1
        %v257 = vadd.f32 %v255, %v256
        %v258 = vrcp.pop 32.0
        %v259 = vmul.f32 %v248, %v258
        %v260 = vmul.f32 %v257, %v258
        %v261 = vmax.f32 %v232, %v236
        %v262 = vmax.f32 %v234, %v238
        %v263 = vmax.f32 %v261, %v262
        %v264 = vrot.slane %v263, 4
        %v265 = vmax.f32 %v263, %v264
        %v266 = vrot.slane %v265, 2
        %v267 = vmax.f32 %v265, %v266
        %v268 = vrot.slane %v267, 1
        %v269 = vmax.f32 %v267, %v268
        %v270 = vmax.f32 %v233, %v237
        %v271 = vmax.f32 %v235, %v239
        %v272 = vmax.f32 %v270, %v271
        %v273 = vrot.slane %v272, 4
        %v274 = vmax.f32 %v272, %v273
        %v275 = vrot.slane %v274, 2
        %v276 = vmax.f32 %v274, %v275
        %v277 = vrot.slane %v276, 1
        %v278 = vmax.f32 %v276, %v277
        %s279 = sld [smem:[#allocation2]]
        %s280 = sld [smem:[#allocation2 + $0x1]]
        %s281 = sld [smem:[#allocation2 + $0x2]]
        %s282 = sld [smem:[#allocation2 + $0x3]]
        %s283 = sld [smem:[#allocation2 + $0x4]]
        %s284 = sld [smem:[#allocation2 + $0x5]]
        %s285 = sld [smem:[#allocation2 + $0x6]]
        %s286 = sld [smem:[#allocation2 + $0x7]]
        %s287 = sld [smem:[#allocation2 + $0x8]]
        %s288 = sld [smem:[#allocation2 + $0x9]]
        %s289 = sld [smem:[#allocation2 + $0xa]]
        %s290 = sld [smem:[#allocation2 + $0xb]]
        %s291 = sld [smem:[#allocation2 + $0xc]]
        %s292 = sld [smem:[#allocation2 + $0xd]]
        %s293 = sld [smem:[#allocation2 + $0xe]]
        %s294 = sld [smem:[#allocation2 + $0xf]]
        %s295 = sld [smem:[#allocation2 + $0x10]]
        %s296 = sld [smem:[#allocation2 + $0x11]]
        %s297 = sld [smem:[#allocation2 + $0x12]]
        %s298 = sld [smem:[#allocation2 + $0x13]]
        %s299 = sld [smem:[#allocation2 + $0x14]]
        %s300 = sld [smem:[#allocation2 + $0x15]]
        %s301 = sld [smem:[#allocation2 + $0x16]]
        %s302 = sld [smem:[#allocation2 + $0x17]]
        %s303 = sld [smem:[#allocation2 + $0x18]]
        %s304 = sld [smem:[#allocation2 + $0x19]]
        %s305 = sld [smem:[#allocation2 + $0x1a]]
        %s306 = sld [smem:[#allocation2 + $0x1b]]
        %s307 = sld [smem:[#allocation2 + $0x1c]]
        %s308 = sld [smem:[#allocation2 + $0x1d]]
        %s309 = sld [smem:[#allocation2 + $0x1e]]
        %s310 = sld [smem:[#allocation2 + $0x1f]]
        %s311 = sld [smem:[#allocation2 + $0x20]]
        %s312 = sld [smem:[#allocation2 + $0x21]]
        %s313 = sld [smem:[#allocation2 + $0x22]]
        %s314 = sld [smem:[#allocation2 + $0x23]]
        %s315 = sld [smem:[#allocation2 + $0x24]]
        %s316 = sld [smem:[#allocation2 + $0x25]]
        %s317 = sld [smem:[#allocation2 + $0x26]]
        %s318 = sld [smem:[#allocation2 + $0x27]]
        %s319 = sld [smem:[#allocation2 + $0x28]]
        %s320 = sld [smem:[#allocation2 + $0x29]]
        %s321 = sld [smem:[#allocation2 + $0x2a]]
        %s322 = sld [smem:[#allocation2 + $0x2b]]
        %s323 = sld [smem:[#allocation2 + $0x2c]]
        %s324 = sld [smem:[#allocation2 + $0x2d]]
        %s325 = sld [smem:[#allocation2 + $0x2e]]
        %s326 = sld [smem:[#allocation2 + $0x2f]]
        %s327 = sld [smem:[#allocation2 + $0x30]]
        %s328 = sld [smem:[#allocation2 + $0x31]]
        %s329 = sld [smem:[#allocation2 + $0x32]]
        %s330 = sld [smem:[#allocation2 + $0x33]]
        %s331 = sld [smem:[#allocation2 + $0x34]]
        %s332 = sld [smem:[#allocation2 + $0x35]]
        %s333 = sld [smem:[#allocation2 + $0x36]]
        %s334 = sld [smem:[#allocation2 + $0x37]]
        %s335 = sld [smem:[#allocation2 + $0x38]]
        %s336 = sld [smem:[#allocation2 + $0x39]]
        %s337 = sld [smem:[#allocation2 + $0x3a]]
        %s338 = sld [smem:[#allocation2 + $0x3b]]
        %s339 = sld [smem:[#allocation2 + $0x3c]]
        %s340 = sld [smem:[#allocation2 + $0x3d]]
        %s341 = sld [smem:[#allocation2 + $0x3e]]
        %s342 = sld [smem:[#allocation2 + $0x3f]]
        %s343 = sld [smem:[#allocation2 + $0x40]]
        %s344 = sld [smem:[#allocation2 + $0x41]]
        %s345 = sld [smem:[#allocation2 + $0x42]]
        %s346 = sld [smem:[#allocation2 + $0x43]]
        %s347 = sld [smem:[#allocation2 + $0x44]]
        %s348 = sld [smem:[#allocation2 + $0x45]]
        %s349 = sld [smem:[#allocation2 + $0x46]]
        %s350 = sld [smem:[#allocation2 + $0x47]]
        %s351 = sld [smem:[#allocation2 + $0x48]]
        %s352 = sld [smem:[#allocation2 + $0x49]]
        %s353 = sld [smem:[#allocation2 + $0x4a]]
        %s354 = sld [smem:[#allocation2 + $0x4b]]
        %s355 = sld [smem:[#allocation2 + $0x4c]]
        %s356 = sld [smem:[#allocation2 + $0x4d]]
        %s357 = sld [smem:[#allocation2 + $0x4e]]
        %s358 = sld [smem:[#allocation2 + $0x4f]]
        %s359 = sld [smem:[#allocation2 + $0x50]]
        %s360 = sld [smem:[#allocation2 + $0x51]]
        %s361 = sld [smem:[#allocation2 + $0x52]]
        %s362 = sld [smem:[#allocation2 + $0x53]]
        %s363 = sld [smem:[#allocation2 + $0x54]]
        %s364 = sld [smem:[#allocation2 + $0x55]]
        %s365 = sld [smem:[#allocation2 + $0x56]]
        %s366 = sld [smem:[#allocation2 + $0x57]]
        %s367 = sld [smem:[#allocation2 + $0x58]]
        %s368 = sld [smem:[#allocation2 + $0x59]]
        %s369 = sld [smem:[#allocation2 + $0x5a]]
        %s370 = sld [smem:[#allocation2 + $0x5b]]
        %s371 = sld [smem:[#allocation2 + $0x5c]]
        %s372 = sld [smem:[#allocation2 + $0x5d]]
        %s373 = sld [smem:[#allocation2 + $0x5e]]
        %s374 = sld [smem:[#allocation2 + $0x5f]]
        %s375 = sld [smem:[#allocation2 + $0x60]]
        %s376 = sld [smem:[#allocation2 + $0x61]]
        %379 = vrot.lane.b32.xlu0 %v259, 3
        %v380 = vpop.permute.xlu0 %379
        %381 = vrot.lane.b32.xlu0 %v260, 3
        %v382 = vpop.permute.xlu0 %381
        %vm383 = vcmask 23552
        %v384 = vsel %vm383, %v380, %v382
        %v387 = vsel %vm383, 0.0, %v380
        %390 = vrot.lane.b32.xlu0 %v269, 3
        %v391 = vpop.permute.xlu0 %390
        %392 = vrot.lane.b32.xlu0 %v278, 3
        %v393 = vpop.permute.xlu0 %392
        %v394 = vsel %vm383, %v391, %v393
        %v397 = vsel %vm383, 0.0, %v391
        %v398 = vld [vmem:[%s1] sm:$0x3]
        %v400 = vlaneseq
        %v401 = vshrl.u32 %v400, 7
        %v402 = vsub.s32 0, %v401
        %v403 = vrot.slane %v398, %v402
        %v404 = vlaneseq
        %v405 = vshrl.u32 %v404, 7
        %v406 = vsub.s32 1, %v405
        %v407 = vrot.slane %v398, %v406
        %v410 = vmul.f32 %v387, %v403
        %v411 = vmul.f32 %v384, %v407
        %v412 = vmul.f32 %v397, %v403
        %v413 = vmul.f32 %v394, %v407
        %414 = vrot.lane.b32.xlu0 %v259, 2
        %v415 = vpop.permute.xlu0 %414
        %416 = vrot.lane.b32.xlu0 %v260, 2
        %v417 = vpop.permute.xlu0 %416
        %vm418 = vcmask 15360
        %v419 = vsel %vm418, %v415, %v417
        %v422 = vsel %vm418, 0.0, %v415
        %423 = vrot.lane.b32.xlu0 %v269, 2
        %v424 = vpop.permute.xlu0 %423
        %425 = vrot.lane.b32.xlu0 %v278, 2
        %v426 = vpop.permute.xlu0 %425
        %v427 = vsel %vm418, %v424, %v426
        %v430 = vsel %vm418, 0.0, %v424
        %s431 = scalar_lea.vmem %s1, 2
        %v432 = vld [vmem:[%s431] sm:$0x3]
        %v434 = vlaneseq
        %v435 = vshrl.u32 %v434, 7
        %v436 = vsub.s32 0, %v435
        %v437 = vrot.slane %v432, %v436
        %v438 = vlaneseq
        %v439 = vshrl.u32 %v438, 7
        %v440 = vsub.s32 1, %v439
        %v441 = vrot.slane %v432, %v440
        %v444 = vmul.f32 %v422, %v437
        %v445 = vmul.f32 %v419, %v441
        %v446 = vmul.f32 %v430, %v437
        %v447 = vmul.f32 %v427, %v441
        %448 = vrot.lane.b32.xlu0 %v259, 1
        %v449 = vpop.permute.xlu0 %448
        %450 = vrot.lane.b32.xlu0 %v260, 1
        %v451 = vpop.permute.xlu0 %450
        %vm452 = vcmask 7168
        %v453 = vsel %vm452, %v449, %v451
        %v456 = vsel %vm452, 0.0, %v449
        %457 = vrot.lane.b32.xlu0 %v269, 1
        %v458 = vpop.permute.xlu0 %457
        %459 = vrot.lane.b32.xlu0 %v278, 1
        %v460 = vpop.permute.xlu0 %459
        %v461 = vsel %vm452, %v458, %v460
        %v464 = vsel %vm452, 0.0, %v458
        %s465 = scalar_lea.vmem %s1, 4
        %v466 = vld [vmem:[%s465] sm:$0x3]
        %v468 = vlaneseq
        %v469 = vshrl.u32 %v468, 7
        %v470 = vsub.s32 0, %v469
        %v471 = vrot.slane %v466, %v470
        %v472 = vlaneseq
        %v473 = vshrl.u32 %v472, 7
        %v474 = vsub.s32 1, %v473
        %v475 = vrot.slane %v466, %v474
        %v478 = vmul.f32 %v456, %v471
        %v479 = vmul.f32 %v453, %v475
        %v480 = vmul.f32 %v464, %v471
        %v481 = vmul.f32 %v461, %v475
        %482 = vrot.lane.b32.xlu0 %v259, 127
        %v483 = vpop.permute.xlu0 %482
        %484 = vrot.lane.b32.xlu0 %v260, 127
        %v485 = vpop.permute.xlu0 %484
        %vm486 = vcmask 1039360
        %v487 = vsel %vm486, %v483, %v485
        %v490 = vsel %vm486, %v485, 0.0
        %491 = vrot.lane.b32.xlu0 %v269, 127
        %v492 = vpop.permute.xlu0 %491
        %493 = vrot.lane.b32.xlu0 %v278, 127
        %v494 = vpop.permute.xlu0 %493
        %v495 = vsel %vm486, %v492, %v494
        %v498 = vsel %vm486, %v494, 0.0
        %s499 = scalar_lea.vmem %s1, 8
        %v500 = vld [vmem:[%s499] sm:$0x3]
        %v502 = vlaneseq
        %v503 = vshrl.u32 %v502, 7
        %v504 = vsub.s32 0, %v503
        %v505 = vrot.slane %v500, %v504
        %v506 = vlaneseq
        %v507 = vshrl.u32 %v506, 7
        %v508 = vsub.s32 1, %v507
        %v509 = vrot.slane %v500, %v508
        %v512 = vmul.f32 %v487, %v505
        %v513 = vmul.f32 %v490, %v509
        %v514 = vmul.f32 %v495, %v505
        %v515 = vmul.f32 %v498, %v509
        %516 = vrot.lane.b32.xlu0 %v259, 126
        %v517 = vpop.permute.xlu0 %516
        %518 = vrot.lane.b32.xlu0 %v260, 126
        %v519 = vpop.permute.xlu0 %518
        %vm520 = vcmask 1031168
        %v521 = vsel %vm520, %v517, %v519
        %v524 = vsel %vm520, %v519, 0.0
        %525 = vrot.lane.b32.xlu0 %v269, 126
        %v526 = vpop.permute.xlu0 %525
        %527 = vrot.lane.b32.xlu0 %v278, 126
        %v528 = vpop.permute.xlu0 %527
        %v529 = vsel %vm520, %v526, %v528
        %v532 = vsel %vm520, %v528, 0.0
        %s533 = scalar_lea.vmem %s1, 10
        %v534 = vld [vmem:[%s533] sm:$0x3]
        %v536 = vlaneseq
        %v537 = vshrl.u32 %v536, 7
        %v538 = vsub.s32 0, %v537
        %v539 = vrot.slane %v534, %v538
        %v540 = vlaneseq
        %v541 = vshrl.u32 %v540, 7
        %v542 = vsub.s32 1, %v541
        %v543 = vrot.slane %v534, %v542
        %v546 = vmul.f32 %v521, %v539
        %v547 = vmul.f32 %v524, %v543
        %v548 = vmul.f32 %v529, %v539
        %v549 = vmul.f32 %v532, %v543
        %550 = vrot.lane.b32.xlu0 %v259, 125
        %v551 = vpop.permute.xlu0 %550
        %552 = vrot.lane.b32.xlu0 %v260, 125
        %v553 = vpop.permute.xlu0 %552
        %vm554 = vcmask 1022976
        %v555 = vsel %vm554, %v551, %v553
        %v558 = vsel %vm554, %v553, 0.0
        %559 = vrot.lane.b32.xlu0 %v269, 125
        %v560 = vpop.permute.xlu0 %559
        %561 = vrot.lane.b32.xlu0 %v278, 125
        %v562 = vpop.permute.xlu0 %561
        %v563 = vsel %vm554, %v560, %v562
        %v566 = vsel %vm554, %v562, 0.0
        %s567 = scalar_lea.vmem %s1, 12
        %v568 = vld [vmem:[%s567] sm:$0x3]
        %v570 = vlaneseq
        %v571 = vshrl.u32 %v570, 7
        %v572 = vsub.s32 0, %v571
        %v573 = vrot.slane %v568, %v572
        %v574 = vlaneseq
        %v575 = vshrl.u32 %v574, 7
        %v576 = vsub.s32 1, %v575
        %v577 = vrot.slane %v568, %v576
        %v580 = vmul.f32 %v555, %v573
        %v581 = vmul.f32 %v558, %v577
        %v582 = vmul.f32 %v563, %v573
        %v583 = vmul.f32 %v566, %v577
        %v584 = vstv %s279
        %v585 = vmul.f32 %v584, %v410
        %v586 = vmul.f32 %v584, %v411
        %v587 = vstv %s328
        %v588 = vmul.f32 %v587, %v412
        %v589 = vmul.f32 %v587, %v413
        %v590 = vstv %s280
        %v591 = vmul.f32 %v590, %v444
        %v592 = vmul.f32 %v590, %v445
        %v593 = vadd.f32 %v585, %v591
        %v594 = vadd.f32 %v586, %v592
        %v595 = vstv %s329
        %v596 = vmul.f32 %v595, %v446
        %v597 = vmul.f32 %v595, %v447
        %v598 = vadd.f32 %v588, %v596
        %v599 = vadd.f32 %v589, %v597
        %v600 = vstv %s281
        %v601 = vmul.f32 %v600, %v478
        %v602 = vmul.f32 %v600, %v479
        %v603 = vadd.f32 %v593, %v601
        %v604 = vadd.f32 %v594, %v602
        %v605 = vstv %s330
        %v606 = vmul.f32 %v605, %v480
        %v607 = vmul.f32 %v605, %v481
        %v608 = vadd.f32 %v598, %v606
        %v609 = vadd.f32 %v599, %v607
        %v610 = vstv %s282
        %v611 = vmul.f32 %v610, %v259
        %v612 = vmul.f32 %v610, %v260
        %v613 = vadd.f32 %v603, %v611
        %v614 = vadd.f32 %v604, %v612
        %v615 = vstv %s331
        %v616 = vmul.f32 %v615, %v269
        %v617 = vmul.f32 %v615, %v278
        %v618 = vadd.f32 %v608, %v616
        %v619 = vadd.f32 %v609, %v617
        %v620 = vstv %s283
        %v621 = vmul.f32 %v620, %v512
        %v622 = vmul.f32 %v620, %v513
        %v623 = vadd.f32 %v613, %v621
        %v624 = vadd.f32 %v614, %v622
        %v625 = vstv %s332
        %v626 = vmul.f32 %v625, %v514
        %v627 = vmul.f32 %v625, %v515
        %v628 = vadd.f32 %v618, %v626
        %v629 = vadd.f32 %v619, %v627
        %v630 = vstv %s284
        %v631 = vmul.f32 %v630, %v546
        %v632 = vmul.f32 %v630, %v547
        %v633 = vadd.f32 %v623, %v631
        %v634 = vadd.f32 %v624, %v632
        %v635 = vstv %s333
        %v636 = vmul.f32 %v635, %v548
        %v637 = vmul.f32 %v635, %v549
        %v638 = vadd.f32 %v628, %v636
        %v639 = vadd.f32 %v629, %v637
        %v640 = vstv %s285
        %v641 = vmul.f32 %v640, %v580
        %v642 = vmul.f32 %v640, %v581
        %v643 = vadd.f32 %v633, %v641
        %v644 = vadd.f32 %v634, %v642
        %v645 = vstv %s334
        %v646 = vmul.f32 %v645, %v582
        %v647 = vmul.f32 %v645, %v583
        %v648 = vadd.f32 %v638, %v646
        %v649 = vadd.f32 %v639, %v647
        %v650 = vadd.f32 %v643, %v648
        %v651 = vadd.f32 %v644, %v649
        %654 = vrot.lane.b32.xlu0 %v650, 48
        %v655 = vpop.permute.xlu0 %654
        %656 = vrot.lane.b32.xlu0 %v651, 48
        %v657 = vpop.permute.xlu0 %656
        %vm658 = vcmask 392192
        %v659 = vsel %vm658, %v655, %v657
        %v662 = vsel %vm658, 0.0, %v655
        %v663 = vadd.f32 %v662, 0.0
        %v664 = vadd.f32 %v659, 0.0
        %v665 = vstv %s286
        %v666 = vmul.f32 %v665, %v410
        %v667 = vmul.f32 %v665, %v411
        %v668 = vstv %s335
        %v669 = vmul.f32 %v668, %v412
        %v670 = vmul.f32 %v668, %v413
        %v671 = vstv %s287
        %v672 = vmul.f32 %v671, %v444
        %v673 = vmul.f32 %v671, %v445
        %v674 = vadd.f32 %v666, %v672
        %v675 = vadd.f32 %v667, %v673
        %v676 = vstv %s336
        %v677 = vmul.f32 %v676, %v446
        %v678 = vmul.f32 %v676, %v447
        %v679 = vadd.f32 %v669, %v677
        %v680 = vadd.f32 %v670, %v678
        %v681 = vstv %s288
        %v682 = vmul.f32 %v681, %v478
        %v683 = vmul.f32 %v681, %v479
        %v684 = vadd.f32 %v674, %v682
        %v685 = vadd.f32 %v675, %v683
        %v686 = vstv %s337
        %v687 = vmul.f32 %v686, %v480
        %v688 = vmul.f32 %v686, %v481
        %v689 = vadd.f32 %v679, %v687
        %v690 = vadd.f32 %v680, %v688
        %v691 = vstv %s289
        %v692 = vmul.f32 %v691, %v259
        %v693 = vmul.f32 %v691, %v260
        %v694 = vadd.f32 %v684, %v692
        %v695 = vadd.f32 %v685, %v693
        %v696 = vstv %s338
        %v697 = vmul.f32 %v696, %v269
        %v698 = vmul.f32 %v696, %v278
        %v699 = vadd.f32 %v689, %v697
        %v700 = vadd.f32 %v690, %v698
        %v701 = vstv %s290
        %v702 = vmul.f32 %v701, %v512
        %v703 = vmul.f32 %v701, %v513
        %v704 = vadd.f32 %v694, %v702
        %v705 = vadd.f32 %v695, %v703
        %v706 = vstv %s339
        %v707 = vmul.f32 %v706, %v514
        %v708 = vmul.f32 %v706, %v515
        %v709 = vadd.f32 %v699, %v707
        %v710 = vadd.f32 %v700, %v708
        %v711 = vstv %s291
        %v712 = vmul.f32 %v711, %v546
        %v713 = vmul.f32 %v711, %v547
        %v714 = vadd.f32 %v704, %v712
        %v715 = vadd.f32 %v705, %v713
        %v716 = vstv %s340
        %v717 = vmul.f32 %v716, %v548
        %v718 = vmul.f32 %v716, %v549
        %v719 = vadd.f32 %v709, %v717
        %v720 = vadd.f32 %v710, %v718
        %v721 = vstv %s292
        %v722 = vmul.f32 %v721, %v580
        %v723 = vmul.f32 %v721, %v581
        %v724 = vadd.f32 %v714, %v722
        %v725 = vadd.f32 %v715, %v723
        %v726 = vstv %s341
        %v727 = vmul.f32 %v726, %v582
        %v728 = vmul.f32 %v726, %v583
        %v729 = vadd.f32 %v719, %v727
        %v730 = vadd.f32 %v720, %v728
        %v731 = vadd.f32 %v724, %v729
        %v732 = vadd.f32 %v725, %v730
        %735 = vrot.lane.b32.xlu0 %v731, 32
        %v736 = vpop.permute.xlu0 %735
        %737 = vrot.lane.b32.xlu0 %v732, 32
        %v738 = vpop.permute.xlu0 %737
        %vm739 = vcmask 261120
        %v740 = vsel %vm739, %v736, %v738
        %v743 = vsel %vm739, 0.0, %v736
        %v744 = vadd.f32 %v743, 0.0
        %v745 = vadd.f32 %v740, 0.0
        %v746 = vstv %s293
        %v747 = vmul.f32 %v746, %v410
        %v748 = vmul.f32 %v746, %v411
        %v749 = vstv %s342
        %v750 = vmul.f32 %v749, %v412
        %v751 = vmul.f32 %v749, %v413
        %v752 = vstv %s294
        %v753 = vmul.f32 %v752, %v444
        %v754 = vmul.f32 %v752, %v445
        %v755 = vadd.f32 %v747, %v753
        %v756 = vadd.f32 %v748, %v754
        %v757 = vstv %s343
        %v758 = vmul.f32 %v757, %v446
        %v759 = vmul.f32 %v757, %v447
        %v760 = vadd.f32 %v750, %v758
        %v761 = vadd.f32 %v751, %v759
        %v762 = vstv %s295
        %v763 = vmul.f32 %v762, %v478
        %v764 = vmul.f32 %v762, %v479
        %v765 = vadd.f32 %v755, %v763
        %v766 = vadd.f32 %v756, %v764
        %v767 = vstv %s344
        %v768 = vmul.f32 %v767, %v480
        %v769 = vmul.f32 %v767, %v481
        %v770 = vadd.f32 %v760, %v768
        %v771 = vadd.f32 %v761, %v769
        %v772 = vstv %s296
        %v773 = vmul.f32 %v772, %v259
        %v774 = vmul.f32 %v772, %v260
        %v775 = vadd.f32 %v765, %v773
        %v776 = vadd.f32 %v766, %v774
        %v777 = vstv %s345
        %v778 = vmul.f32 %v777, %v269
        %v779 = vmul.f32 %v777, %v278
        %v780 = vadd.f32 %v770, %v778
        %v781 = vadd.f32 %v771, %v779
        %v782 = vstv %s297
        %v783 = vmul.f32 %v782, %v512
        %v784 = vmul.f32 %v782, %v513
        %v785 = vadd.f32 %v775, %v783
        %v786 = vadd.f32 %v776, %v784
        %v787 = vstv %s346
        %v788 = vmul.f32 %v787, %v514
        %v789 = vmul.f32 %v787, %v515
        %v790 = vadd.f32 %v780, %v788
        %v791 = vadd.f32 %v781, %v789
        %v792 = vstv %s298
        %v793 = vmul.f32 %v792, %v546
        %v794 = vmul.f32 %v792, %v547
        %v795 = vadd.f32 %v785, %v793
        %v796 = vadd.f32 %v786, %v794
        %v797 = vstv %s347
        %v798 = vmul.f32 %v797, %v548
        %v799 = vmul.f32 %v797, %v549
        %v800 = vadd.f32 %v790, %v798
        %v801 = vadd.f32 %v791, %v799
        %v802 = vstv %s299
        %v803 = vmul.f32 %v802, %v580
        %v804 = vmul.f32 %v802, %v581
        %v805 = vadd.f32 %v795, %v803
        %v806 = vadd.f32 %v796, %v804
        %v807 = vstv %s348
        %v808 = vmul.f32 %v807, %v582
        %v809 = vmul.f32 %v807, %v583
        %v810 = vadd.f32 %v800, %v808
        %v811 = vadd.f32 %v801, %v809
        %v812 = vadd.f32 %v805, %v810
        %v813 = vadd.f32 %v806, %v811
        %816 = vrot.lane.b32.xlu0 %v812, 16
        %v817 = vpop.permute.xlu0 %816
        %818 = vrot.lane.b32.xlu0 %v813, 16
        %v819 = vpop.permute.xlu0 %818
        %vm820 = vcmask 130048
        %v821 = vsel %vm820, %v817, %v819
        %v824 = vsel %vm820, 0.0, %v817
        %v825 = vadd.f32 %v824, 0.0
        %v826 = vadd.f32 %v821, 0.0
        %v827 = vstv %s300
        %v828 = vmul.f32 %v827, %v410
        %v829 = vmul.f32 %v827, %v411
        %v830 = vstv %s349
        %v831 = vmul.f32 %v830, %v412
        %v832 = vmul.f32 %v830, %v413
        %v833 = vstv %s301
        %v834 = vmul.f32 %v833, %v444
        %v835 = vmul.f32 %v833, %v445
        %v836 = vadd.f32 %v828, %v834
        %v837 = vadd.f32 %v829, %v835
        %v838 = vstv %s350
        %v839 = vmul.f32 %v838, %v446
        %v840 = vmul.f32 %v838, %v447
        %v841 = vadd.f32 %v831, %v839
        %v842 = vadd.f32 %v832, %v840
        %v843 = vstv %s302
        %v844 = vmul.f32 %v843, %v478
        %v845 = vmul.f32 %v843, %v479
        %v846 = vadd.f32 %v836, %v844
        %v847 = vadd.f32 %v837, %v845
        %v848 = vstv %s351
        %v849 = vmul.f32 %v848, %v480
        %v850 = vmul.f32 %v848, %v481
        %v851 = vadd.f32 %v841, %v849
        %v852 = vadd.f32 %v842, %v850
        %v853 = vstv %s303
        %v854 = vmul.f32 %v853, %v259
        %v855 = vmul.f32 %v853, %v260
        %v856 = vadd.f32 %v846, %v854
        %v857 = vadd.f32 %v847, %v855
        %v858 = vstv %s352
        %v859 = vmul.f32 %v858, %v269
        %v860 = vmul.f32 %v858, %v278
        %v861 = vadd.f32 %v851, %v859
        %v862 = vadd.f32 %v852, %v860
        %v863 = vstv %s304
        %v864 = vmul.f32 %v863, %v512
        %v865 = vmul.f32 %v863, %v513
        %v866 = vadd.f32 %v856, %v864
        %v867 = vadd.f32 %v857, %v865
        %v868 = vstv %s353
        %v869 = vmul.f32 %v868, %v514
        %v870 = vmul.f32 %v868, %v515
        %v871 = vadd.f32 %v861, %v869
        %v872 = vadd.f32 %v862, %v870
        %v873 = vstv %s305
        %v874 = vmul.f32 %v873, %v546
        %v875 = vmul.f32 %v873, %v547
        %v876 = vadd.f32 %v866, %v874
        %v877 = vadd.f32 %v867, %v875
        %v878 = vstv %s354
        %v879 = vmul.f32 %v878, %v548
        %v880 = vmul.f32 %v878, %v549
        %v881 = vadd.f32 %v871, %v879
        %v882 = vadd.f32 %v872, %v880
        %v883 = vstv %s306
        %v884 = vmul.f32 %v883, %v580
        %v885 = vmul.f32 %v883, %v581
        %v886 = vadd.f32 %v876, %v884
        %v887 = vadd.f32 %v877, %v885
        %v888 = vstv %s355
        %v889 = vmul.f32 %v888, %v582
        %v890 = vmul.f32 %v888, %v583
        %v891 = vadd.f32 %v881, %v889
        %v892 = vadd.f32 %v882, %v890
        %v893 = vadd.f32 %v886, %v891
        %v894 = vadd.f32 %v887, %v892
        %v895 = vadd.f32 %v893, 0.0
        %v896 = vadd.f32 %v894, 0.0
        %v897 = vstv %s307
        %v898 = vmul.f32 %v897, %v410
        %v899 = vmul.f32 %v897, %v411
        %v900 = vstv %s356
        %v901 = vmul.f32 %v900, %v412
        %v902 = vmul.f32 %v900, %v413
        %v903 = vstv %s308
        %v904 = vmul.f32 %v903, %v444
        %v905 = vmul.f32 %v903, %v445
        %v906 = vadd.f32 %v898, %v904
        %v907 = vadd.f32 %v899, %v905
        %v908 = vstv %s357
        %v909 = vmul.f32 %v908, %v446
        %v910 = vmul.f32 %v908, %v447
        %v911 = vadd.f32 %v901, %v909
        %v912 = vadd.f32 %v902, %v910
        %v913 = vstv %s309
        %v914 = vmul.f32 %v913, %v478
        %v915 = vmul.f32 %v913, %v479
        %v916 = vadd.f32 %v906, %v914
        %v917 = vadd.f32 %v907, %v915
        %v918 = vstv %s358
        %v919 = vmul.f32 %v918, %v480
        %v920 = vmul.f32 %v918, %v481
        %v921 = vadd.f32 %v911, %v919
        %v922 = vadd.f32 %v912, %v920
        %v923 = vstv %s310
        %v924 = vmul.f32 %v923, %v259
        %v925 = vmul.f32 %v923, %v260
        %v926 = vadd.f32 %v916, %v924
        %v927 = vadd.f32 %v917, %v925
        %v928 = vstv %s359
        %v929 = vmul.f32 %v928, %v269
        %v930 = vmul.f32 %v928, %v278
        %v931 = vadd.f32 %v921, %v929
        %v932 = vadd.f32 %v922, %v930
        %v933 = vstv %s311
        %v934 = vmul.f32 %v933, %v512
        %v935 = vmul.f32 %v933, %v513
        %v936 = vadd.f32 %v926, %v934
        %v937 = vadd.f32 %v927, %v935
        %v938 = vstv %s360
        %v939 = vmul.f32 %v938, %v514
        %v940 = vmul.f32 %v938, %v515
        %v941 = vadd.f32 %v931, %v939
        %v942 = vadd.f32 %v932, %v940
        %v943 = vstv %s312
        %v944 = vmul.f32 %v943, %v546
        %v945 = vmul.f32 %v943, %v547
        %v946 = vadd.f32 %v936, %v944
        %v947 = vadd.f32 %v937, %v945
        %v948 = vstv %s361
        %v949 = vmul.f32 %v948, %v548
        %v950 = vmul.f32 %v948, %v549
        %v951 = vadd.f32 %v941, %v949
        %v952 = vadd.f32 %v942, %v950
        %v953 = vstv %s313
        %v954 = vmul.f32 %v953, %v580
        %v955 = vmul.f32 %v953, %v581
        %v956 = vadd.f32 %v946, %v954
        %v957 = vadd.f32 %v947, %v955
        %v958 = vstv %s362
        %v959 = vmul.f32 %v958, %v582
        %v960 = vmul.f32 %v958, %v583
        %v961 = vadd.f32 %v951, %v959
        %v962 = vadd.f32 %v952, %v960
        %v963 = vadd.f32 %v956, %v961
        %v964 = vadd.f32 %v957, %v962
        %967 = vrot.lane.b32.xlu0 %v963, 112
        %v968 = vpop.permute.xlu0 %967
        %969 = vrot.lane.b32.xlu0 %v964, 112
        %v970 = vpop.permute.xlu0 %969
        %vm971 = vcmask 916480
        %v972 = vsel %vm971, %v968, %v970
        %v975 = vsel %vm971, %v970, 0.0
        %v976 = vadd.f32 %v663, %v972
        %v977 = vadd.f32 %v664, %v975
        %v978 = vstv %s314
        %v979 = vmul.f32 %v978, %v410
        %v980 = vmul.f32 %v978, %v411
        %v981 = vstv %s363
        %v982 = vmul.f32 %v981, %v412
        %v983 = vmul.f32 %v981, %v413
        %v984 = vstv %s315
        %v985 = vmul.f32 %v984, %v444
        %v986 = vmul.f32 %v984, %v445
        %v987 = vadd.f32 %v979, %v985
        %v988 = vadd.f32 %v980, %v986
        %v989 = vstv %s364
        %v990 = vmul.f32 %v989, %v446
        %v991 = vmul.f32 %v989, %v447
        %v992 = vadd.f32 %v982, %v990
        %v993 = vadd.f32 %v983, %v991
        %v994 = vstv %s316
        %v995 = vmul.f32 %v994, %v478
        %v996 = vmul.f32 %v994, %v479
        %v997 = vadd.f32 %v987, %v995
        %v998 = vadd.f32 %v988, %v996
        %v999 = vstv %s365
        %v1000 = vmul.f32 %v999, %v480
        %v1001 = vmul.f32 %v999, %v481
        %v1002 = vadd.f32 %v992, %v1000
        %v1003 = vadd.f32 %v993, %v1001
        %v1004 = vstv %s317
        %v1005 = vmul.f32 %v1004, %v259
        %v1006 = vmul.f32 %v1004, %v260
        %v1007 = vadd.f32 %v997, %v1005
        %v1008 = vadd.f32 %v998, %v1006
        %v1009 = vstv %s366
        %v1010 = vmul.f32 %v1009, %v269
        %v1011 = vmul.f32 %v1009, %v278
        %v1012 = vadd.f32 %v1002, %v1010
        %v1013 = vadd.f32 %v1003, %v1011
        %v1014 = vstv %s318
        %v1015 = vmul.f32 %v1014, %v512
        %v1016 = vmul.f32 %v1014, %v513
        %v1017 = vadd.f32 %v1007, %v1015
        %v1018 = vadd.f32 %v1008, %v1016
        %v1019 = vstv %s367
        %v1020 = vmul.f32 %v1019, %v514
        %v1021 = vmul.f32 %v1019, %v515
        %v1022 = vadd.f32 %v1012, %v1020
        %v1023 = vadd.f32 %v1013, %v1021
        %v1024 = vstv %s319
        %v1025 = vmul.f32 %v1024, %v546
        %v1026 = vmul.f32 %v1024, %v547
        %v1027 = vadd.f32 %v1017, %v1025
        %v1028 = vadd.f32 %v1018, %v1026
        %v1029 = vstv %s368
        %v1030 = vmul.f32 %v1029, %v548
        %v1031 = vmul.f32 %v1029, %v549
        %v1032 = vadd.f32 %v1022, %v1030
        %v1033 = vadd.f32 %v1023, %v1031
        %v1034 = vstv %s320
        %v1035 = vmul.f32 %v1034, %v580
        %v1036 = vmul.f32 %v1034, %v581
        %v1037 = vadd.f32 %v1027, %v1035
        %v1038 = vadd.f32 %v1028, %v1036
        %v1039 = vstv %s369
        %v1040 = vmul.f32 %v1039, %v582
        %v1041 = vmul.f32 %v1039, %v583
        %v1042 = vadd.f32 %v1032, %v1040
        %v1043 = vadd.f32 %v1033, %v1041
        %v1044 = vadd.f32 %v1037, %v1042
        %v1045 = vadd.f32 %v1038, %v1043
        %1048 = vrot.lane.b32.xlu0 %v1044, 96
        %v1049 = vpop.permute.xlu0 %1048
        %1050 = vrot.lane.b32.xlu0 %v1045, 96
        %v1051 = vpop.permute.xlu0 %1050
        %vm1052 = vcmask 785408
        %v1053 = vsel %vm1052, %v1049, %v1051
        %v1056 = vsel %vm1052, %v1051, 0.0
        %v1057 = vadd.f32 %v744, %v1053
        %v1058 = vadd.f32 %v745, %v1056
        %v1059 = vstv %s321
        %v1060 = vmul.f32 %v1059, %v410
        %v1061 = vmul.f32 %v1059, %v411
        %v1062 = vstv %s370
        %v1063 = vmul.f32 %v1062, %v412
        %v1064 = vmul.f32 %v1062, %v413
        %v1065 = vstv %s322
        %v1066 = vmul.f32 %v1065, %v444
        %v1067 = vmul.f32 %v1065, %v445
        %v1068 = vadd.f32 %v1060, %v1066
        %v1069 = vadd.f32 %v1061, %v1067
        %v1070 = vstv %s371
        %v1071 = vmul.f32 %v1070, %v446
        %v1072 = vmul.f32 %v1070, %v447
        %v1073 = vadd.f32 %v1063, %v1071
        %v1074 = vadd.f32 %v1064, %v1072
        %v1075 = vstv %s323
        %v1076 = vmul.f32 %v1075, %v478
        %v1077 = vmul.f32 %v1075, %v479
        %v1078 = vadd.f32 %v1068, %v1076
        %v1079 = vadd.f32 %v1069, %v1077
        %v1080 = vstv %s372
        %v1081 = vmul.f32 %v1080, %v480
        %v1082 = vmul.f32 %v1080, %v481
        %v1083 = vadd.f32 %v1073, %v1081
        %v1084 = vadd.f32 %v1074, %v1082
        %v1085 = vstv %s324
        %v1086 = vmul.f32 %v1085, %v259
        %v1087 = vmul.f32 %v1085, %v260
        %v1088 = vadd.f32 %v1078, %v1086
        %v1089 = vadd.f32 %v1079, %v1087
        %v1090 = vstv %s373
        %v1091 = vmul.f32 %v1090, %v269
        %v1092 = vmul.f32 %v1090, %v278
        %v1093 = vadd.f32 %v1083, %v1091
        %v1094 = vadd.f32 %v1084, %v1092
        %v1095 = vstv %s325
        %v1096 = vmul.f32 %v1095, %v512
        %v1097 = vmul.f32 %v1095, %v513
        %v1098 = vadd.f32 %v1088, %v1096
        %v1099 = vadd.f32 %v1089, %v1097
        %v1100 = vstv %s374
        %v1101 = vmul.f32 %v1100, %v514
        %v1102 = vmul.f32 %v1100, %v515
        %v1103 = vadd.f32 %v1093, %v1101
        %v1104 = vadd.f32 %v1094, %v1102
        %v1105 = vstv %s326
        %v1106 = vmul.f32 %v1105, %v546
        %v1107 = vmul.f32 %v1105, %v547
        %v1108 = vadd.f32 %v1098, %v1106
        %v1109 = vadd.f32 %v1099, %v1107
        %v1110 = vstv %s375
        %v1111 = vmul.f32 %v1110, %v548
        %v1112 = vmul.f32 %v1110, %v549
        %v1113 = vadd.f32 %v1103, %v1111
        %v1114 = vadd.f32 %v1104, %v1112
        %v1115 = vstv %s327
        %v1116 = vmul.f32 %v1115, %v580
        %v1117 = vmul.f32 %v1115, %v581
        %v1118 = vadd.f32 %v1108, %v1116
        %v1119 = vadd.f32 %v1109, %v1117
        %v1120 = vstv %s376
        %v1121 = vmul.f32 %v1120, %v582
        %v1122 = vmul.f32 %v1120, %v583
        %v1123 = vadd.f32 %v1113, %v1121
        %v1124 = vadd.f32 %v1114, %v1122
        %v1125 = vadd.f32 %v1118, %v1123
        %v1126 = vadd.f32 %v1119, %v1124
        %1129 = vrot.lane.b32.xlu0 %v1125, 80
        %v1130 = vpop.permute.xlu0 %1129
        %1131 = vrot.lane.b32.xlu0 %v1126, 80
        %v1132 = vpop.permute.xlu0 %1131
        %vm1133 = vcmask 654336
        %v1134 = vsel %vm1133, %v1130, %v1132
        %v1137 = vsel %vm1133, %v1132, 0.0
        %v1138 = vadd.f32 %v825, %v1134
        %v1139 = vadd.f32 %v826, %v1137
        %v1140 = vadd.f32 %v976, %v1057
        %v1141 = vadd.f32 %v977, %v1058
        %v1142 = vadd.f32 %v1138, %v895
        %v1143 = vadd.f32 %v1139, %v896
        %v1144 = vadd.f32 %v1140, %v1142
        %v1145 = vadd.f32 %v1141, %v1143
        %v1146 = vxor.u32 %v1144, 2147483648
        %v1147 = vxor.u32 %v1145, 2147483648
        %v1148 = vmul.f32 %v1146, 1.442695
        %v1149 = vpow.pop %v1148
        %v1150 = vmul.f32 %v1147, 1.442695
        %v1151 = vpow.pop %v1150
        %v1152 = vadd.f32 %v1149, 1.0
        %v1153 = vadd.f32 %v1151, 1.0
        %v1154 = vrcp.pop %v1152
        %v1155 = vmul.f32 1.0, %v1154
        %v1156 = vrcp.pop %v1153
        %v1157 = vmul.f32 1.0, %v1156
        %v1158 = vld [vmem:[%s221] sm:$0xff]
        %v1159 = vld [vmem:[%s221 + $0x8] sm:$0xff]
        %v1160 = vld [vmem:[%s221 + $0x10] sm:$0xff]
        %v1161 = vld [vmem:[%s221 + $0x18] sm:$0xff]
        %v1162 = vld [vmem:[%s221 + $0x20] sm:$0xff]
        %v1163 = vld [vmem:[%s221 + $0x28] sm:$0xff]
        %v1164 = vld [vmem:[%s221 + $0x30] sm:$0xff]
        %v1165 = vld [vmem:[%s221 + $0x38] sm:$0xff]
        %v1166 = vlaneseq
        %v1167 = vshrl.u32 %v1166, 7
        %v1168 = vsub.s32 0, %v1167
        %v1169 = vrot.slane %v1155, %v1168
        %v1170 = vlaneseq
        %v1171 = vshrl.u32 %v1170, 7
        %v1172 = vsub.s32 0, %v1171
        %v1173 = vrot.slane %v1157, %v1172
        %v1174 = vmul.f32 %v1158, %v1169
        %v1175 = vmul.f32 %v1159, %v1173
        %v1176 = vmul.f32 %v1160, %v1169
        %v1177 = vmul.f32 %v1161, %v1173
        %v1178 = vmul.f32 %v1162, %v1169
        %v1179 = vmul.f32 %v1163, %v1173
        %v1180 = vmul.f32 %v1164, %v1169
        %v1181 = vmul.f32 %v1165, %v1173
        %1182 = vst [vmem:[%s231] sm:$0xff] %v1174
        %1183 = vst [vmem:[%s231 + $0x8] sm:$0xff] %v1175
        %1184 = vst [vmem:[%s231 + $0x10] sm:$0xff] %v1176
        %1185 = vst [vmem:[%s231 + $0x18] sm:$0xff] %v1177
        %1186 = vst [vmem:[%s231 + $0x20] sm:$0xff] %v1178
        %1187 = vst [vmem:[%s231 + $0x28] sm:$0xff] %v1179
        %1188 = vst [vmem:[%s231 + $0x30] sm:$0xff] %v1180
        %1189 = vst [vmem:[%s231 + $0x38] sm:$0xff] %v1181
        %p1190 = scmp.lt.s32.totalorder %s16, 1
        %s1191 = scalar_select %p1190, %s16, 1
        %s1192 = smul.addr %s1191, 8
        %s1193 = smul.addr %s1192, 8
        %s1194 = scalar_lea.vmem %s4, %s1193
        // Predicated region
        $region41: #{sa_forward.1} parent=35 // pred_check
          %p1195 = pneg %p128
        $region42: #{sa_forward.1} parent=35 // pred_check_branch
          %1197 = sbr.rel (%p1195) target = $region44
        $region43: #{sa_forward.1} parent=35 // pred_region
          _
        $region44: #{sa_forward.1} parent=35 // pred_fallthru
          _
      $region36: #{sa_forward.1} parent=5 // pred_fallthru
        _
      %p1198 = scmp.le.s32.totalorder 2, %s11
      // Predicated region
      $region45: #{sa_forward.1} parent=5 // pred_check
        %p1199 = pneg %p1198
      $region46: #{sa_forward.1} parent=5 // pred_check_branch
        %1201 = sbr.rel (%p1199) target = $region48
      $region47: #{sa_forward.1} parent=5 // pred_region
        %s1202 = ssub.s32 %s11, 2
        // Predicated region
        $region49: #{sa_forward.1} parent=47 // pred_check
          %p1203 = pneg %p134
        $region50: #{sa_forward.1} parent=47 // pred_check_branch
          %1205 = sbr.rel (%p1203) target = $region52
        $region51: #{sa_forward.1} parent=47 // pred_region
          %p1206 = scmp.lt.s32.totalorder %s17, 1
          %s1207 = scalar_select %p1206, %s17, 1
          %s1208 = smul.addr %s1207, 8
          %s1209 = smul.addr %s1208, 8
          %s1210 = scalar_lea.vmem %s4, %s1209
        $region52: #{sa_forward.1} parent=47 // pred_fallthru
          _
      $region48: #{sa_forward.1} parent=5 // pred_fallthru
        _
    $region6: #{sa_forward.1} parent=1 // loop_footer
      %s15 = sadd.s32 1, %s11
    $region7: #{sa_forward.1} parent=1 // loop_footer_branch
      %10 = sbr.rel target = $region3
    $region8: #{sa_forward.1} parent=1 // loop_exit
      _
    %1211 = vsyncpa [#allocation3], 1
    %s1212 = scalar_lea.sflag [#allocation3], 1
    %1213 = vsyncpa %s1212, 1

</llo_original>
